<compile_context>
chip_gen: v6e
topology: v6e:2x2x1
jax: 0.10.0
libtpu: 0.0.40
codegen_flags: <defaults>
</compile_context>

<pallas_src>
import functools

import jax
import jax.numpy as jnp
from jax import lax
from jax.experimental import pallas as pl
from jax.experimental.pallas import tpu as pltpu

BLOCK_DIM = 256  # matches self.block_dim = [256] in the PyTorch module
EPS = 1e-8


def _sim_kernel(img_ref, cap_ref, o_ref, *, n_img_blk, n_cap_blk, block):
    """One (TM, TN) output tile:
       sims[a, b] = sum_t max_v <img_blk[a, v, :], cap_blk[b, t, :]>.

    img_ref: (TM, img_dim) block-l2-normalized image embeddings (matmul dtype).
    cap_ref: (TN, cap_dim) full-vector + block-l2-normalized captions.
    All normalization is done in the wrapper; the kernel is matmul-only.
    """
    dn = (((1,), (1,)), ((), ()))   # contract last dim of LHS with last dim of RHS

    sims = None
    # Small static trip counts (dim // 256): unrolled Python loops are fine here.
    # For very large feature dims, switch to lax.fori_loop + a VMEM f32 scratch
    # accumulator to bound live ranges.
    for t in range(n_cap_blk):
        cb = cap_ref[:, t * block:(t + 1) * block]               # (TN, block)
        best = lax.dot_general(img_ref[:, 0:block], cb, dn,
                               preferred_element_type=jnp.float32)
        for v in range(1, n_img_blk):
            logits = lax.dot_general(img_ref[:, v * block:(v + 1) * block], cb,
                                     dn, preferred_element_type=jnp.float32)
            best = jnp.maximum(best, logits)                     # max over image blocks v
        sims = best if sims is None else sims + best             # sum over caption blocks t

    o_ref[...] = sims.astype(o_ref.dtype)


def _block_l2norm_f32(x_f32, block):
    """L2-normalize each contiguous feature block of width `block` (f32 in/out)."""
    n, d = x_f32.shape
    xb = x_f32.reshape(n, d // block, block)
    norm = jnp.sqrt(jnp.sum(xb * xb, axis=-1, keepdims=True)) + EPS
    return (xb / norm).reshape(n, d)


def _vmem_capacity_bytes():
    try:
        info = pltpu.get_tpu_info()
        return int(getattr(info, "vmem_capacity_bytes", 64 * 1024 * 1024))
    except Exception:
        return 64 * 1024 * 1024   # conservative v7x-per-TC fallback


def encoder_similarity(img_emb, cap_emb, bin_score=None, *,
                       block_dim=BLOCK_DIM, tm=256, tn=256,
                       matmul_dtype=jnp.bfloat16):
    """Pallas equivalent of EncoderSimilarity.forward.

    `bin_score` is a registered parameter of the PyTorch module but is unused in
    forward(); accepted only for interface parity.
    """
    del bin_score  # unused in the reference forward pass

    n_img, img_dim = img_emb.shape
    n_cap, cap_dim = cap_emb.shape

    # The PyTorch reference silently drops remainder features via torch.chunk //;
    # here we require clean division to avoid silent truncation.
    assert img_dim % block_dim == 0, "img_dim must be a multiple of block_dim"
    assert cap_dim % block_dim == 0, "cap_dim must be a multiple of block_dim"
    n_img_blk = img_dim // block_dim
    n_cap_blk = cap_dim // block_dim
    assert n_img_blk >= 1 and n_cap_blk >= 1

    # ---- All normalization hoisted out of the kernel (one f32 XLA pass each) ----
    # Caption: full-vector l2norm followed by per-block l2norm (matches the
    # reference exactly), done in a single f32 pass (no intermediate bf16 trip).
    capf = cap_emb.astype(jnp.float32)
    capf = capf / (jnp.sqrt(jnp.sum(capf * capf, axis=-1, keepdims=True)) + EPS)
    cap_n = _block_l2norm_f32(capf, block_dim).astype(matmul_dtype)
    # Image: per-block l2norm only.
    img_n = _block_l2norm_f32(img_emb.astype(jnp.float32),
                              block_dim).astype(matmul_dtype)

    mx_itemsize = jnp.dtype(matmul_dtype).itemsize
    vmem_cap = _vmem_capacity_bytes()

    # ---- Tile sizes ----
    tm = min(tm, n_img)
    assert n_img % tm == 0, "n_img must be a multiple of the row tile TM"

    # Keep the whole normalized caption matrix VMEM-resident (fetched once) when
    # it, plus the widened output tile, comfortably fits; otherwise tile it.
    cap_bytes = n_cap * cap_dim * mx_itemsize
    cap_resident = (cap_bytes <= vmem_cap // 6
                    and 3 * tm * n_cap * 4 <= vmem_cap // 3)
    if cap_resident:
        tn = n_cap
    else:
        tn = min(tn, n_cap)
        assert n_cap % tn == 0, "n_cap must be a multiple of the col tile TN"

    grid_rows = n_img // tm
    grid_cols = n_cap // tn
    # v7x has 2 TensorCores: make sure at least one parallel axis has extent >= 2
    # when the problem allows it (harmless on single-TC v5e/v6e).
    if grid_rows * grid_cols < 2 and tm % 16 == 0:
        tm //= 2
        grid_rows = n_img // tm
    grid = (grid_rows, grid_cols)

    kernel = functools.partial(
        _sim_kernel, n_img_blk=n_img_blk, n_cap_blk=n_cap_blk, block=block_dim)

    # ---- VMEM budget from the actual tile footprint + real chip capacity ----
    cap_bufs = 1 if cap_resident else 2
    est = (2 * tm * img_dim * mx_itemsize        # img tile, double buffered
           + cap_bufs * tn * cap_dim * mx_itemsize   # cap tile(s)
           + 2 * tm * tn * 4                     # f32 output tile, double buffered
           + 2 * tm * tn * 4)                    # in-kernel f32 temps (best + sims)
    vmem_limit = int(min(max(int(est * 1.5), 16 * 1024 * 1024),
                         int(vmem_cap * 0.6)))

    return pl.pallas_call(
        kernel,
        grid=grid,
        in_specs=[
            pl.BlockSpec((tm, img_dim), lambda i, j: (i, 0)),
            pl.BlockSpec((tn, cap_dim), lambda i, j: (j, 0)),
        ],
        out_specs=pl.BlockSpec((tm, tn), lambda i, j: (i, j)),
        out_shape=jax.ShapeDtypeStruct((n_img, n_cap), jnp.float32),
        compiler_params=pltpu.CompilerParams(
            dimension_semantics=("parallel", "parallel"),
            vmem_limit_bytes=vmem_limit),
    )(img_n, cap_n)


def _reference(img_emb, cap_emb, block_dim=BLOCK_DIM):
    """Pure-JAX f32 reference mirroring the PyTorch forward exactly."""
    def l2norm(x, axis):
        return x / (jnp.sqrt(jnp.sum(x * x, axis=axis, keepdims=True)) + EPS)

    cap_emb = l2norm(cap_emb.astype(jnp.float32), -1)
    img_emb = img_emb.astype(jnp.float32)
    n_img, img_dim = img_emb.shape
    n_cap, cap_dim = cap_emb.shape
    v, t = img_dim // block_dim, cap_dim // block_dim
    img_b = l2norm(img_emb.reshape(n_img, v, block_dim), -1)
    cap_b = l2norm(cap_emb.reshape(n_cap, t, block_dim), -1)
    logits = jnp.einsum('avc,btc->abvt', img_b, cap_b)
    return jnp.max(logits, axis=-2).sum(axis=-1)


if __name__ == "__main__":
    key = jax.random.PRNGKey(0)
    k_img, k_cap = jax.random.split(key)

    # Small but tile-friendly shapes: 2 image feature blocks and 3 caption
    # feature blocks of width 256; VMEM-resident caption; grid split over rows.
    n_img, n_cap = 256, 256
    img_dim = 2 * BLOCK_DIM   # 512
    cap_dim = 3 * BLOCK_DIM   # 768

    img_emb = jax.random.normal(k_img, (n_img, img_dim), dtype=jnp.float32)
    cap_emb = jax.random.normal(k_cap, (n_cap, cap_dim), dtype=jnp.float32)

    # Deterministic parameter init (registered but unused in forward).
    bin_score = jnp.array(0.0, dtype=jnp.float32)

    sims = encoder_similarity(img_emb, cap_emb, bin_score)
    sims = jax.block_until_ready(sims)

    ref = _reference(img_emb, cap_emb)
    assert sims.shape == (n_img, n_cap)
    # bf16 MXU operands (f32 accumulation) vs the pure-f32 reference: ~1e-3 level.
    assert jnp.allclose(sims, ref, atol=5e-3, rtol=5e-3), "mismatch vs reference"

    print("KERNEL_OK")
</pallas_src>

<mosaic_0001>
module attributes {stable_mosaic.version = 11 : i64} {
  func.func @_sim_kernel(%arg0: i32, %arg1: i32, %arg2: memref<128x512xbf16, #tpu.memory_space<vmem>>, %arg3: memref<256x768xbf16, #tpu.memory_space<vmem>>, %arg4: memref<128x256xf32, #tpu.memory_space<vmem>>) attributes {dimension_semantics = [#tpu.dimension_semantics<parallel>, #tpu.dimension_semantics<parallel>], iteration_bounds = array<i64: 2, 1>, scalar_prefetch = 0 : i64, scratch_operands = 0 : i64, tpu.core_type = #tpu.core_type<tc>, window_params = [{transform_indices = @transform_0, window_bounds = array<i64: 128, 512>}, {transform_indices = @transform_1, window_bounds = array<i64: 256, 768>}, {transform_indices = @transform_2, window_bounds = array<i64: 128, 256>}]} {
    %c0 = arith.constant 0 : index
    %c0_0 = arith.constant 0 : index
    %0 = vector.load %arg3[%c0, %c0_0] : memref<256x768xbf16, #tpu.memory_space<vmem>>, vector<256x256xbf16>
    %c0_1 = arith.constant 0 : index
    %c0_2 = arith.constant 0 : index
    %1 = vector.load %arg2[%c0_1, %c0_2] : memref<128x512xbf16, #tpu.memory_space<vmem>>, vector<128x256xbf16>
    %cst = arith.constant dense<0.000000e+00> : vector<128x256xf32>
    %2 = tpu.matmul %1, %0, %cst {dimension_numbers = #tpu.dot_dimension_numbers<[1], [1], [0], [0], [0, 0, 1, 0], [], []>} : vector<128x256xbf16>, vector<256x256xbf16>, vector<128x256xf32> -> vector<128x256xf32>
    %c0_3 = arith.constant 0 : index
    %c256 = arith.constant 256 : index
    %3 = vector.load %arg2[%c0_3, %c256] : memref<128x512xbf16, #tpu.memory_space<vmem>>, vector<128x256xbf16>
    %cst_4 = arith.constant dense<0.000000e+00> : vector<128x256xf32>
    %4 = tpu.matmul %3, %0, %cst_4 {dimension_numbers = #tpu.dot_dimension_numbers<[1], [1], [0], [0], [0, 0, 1, 0], [], []>} : vector<128x256xbf16>, vector<256x256xbf16>, vector<128x256xf32> -> vector<128x256xf32>
    %5 = arith.maximumf %2, %4 : vector<128x256xf32>
    %c0_5 = arith.constant 0 : index
    %c256_6 = arith.constant 256 : index
    %6 = vector.load %arg3[%c0_5, %c256_6] : memref<256x768xbf16, #tpu.memory_space<vmem>>, vector<256x256xbf16>
    %c0_7 = arith.constant 0 : index
    %c0_8 = arith.constant 0 : index
    %7 = vector.load %arg2[%c0_7, %c0_8] : memref<128x512xbf16, #tpu.memory_space<vmem>>, vector<128x256xbf16>
    %cst_9 = arith.constant dense<0.000000e+00> : vector<128x256xf32>
    %8 = tpu.matmul %7, %6, %cst_9 {dimension_numbers = #tpu.dot_dimension_numbers<[1], [1], [0], [0], [0, 0, 1, 0], [], []>} : vector<128x256xbf16>, vector<256x256xbf16>, vector<128x256xf32> -> vector<128x256xf32>
    %c0_10 = arith.constant 0 : index
    %c256_11 = arith.constant 256 : index
    %9 = vector.load %arg2[%c0_10, %c256_11] : memref<128x512xbf16, #tpu.memory_space<vmem>>, vector<128x256xbf16>
    %cst_12 = arith.constant dense<0.000000e+00> : vector<128x256xf32>
    %10 = tpu.matmul %9, %6, %cst_12 {dimension_numbers = #tpu.dot_dimension_numbers<[1], [1], [0], [0], [0, 0, 1, 0], [], []>} : vector<128x256xbf16>, vector<256x256xbf16>, vector<128x256xf32> -> vector<128x256xf32>
    %11 = arith.maximumf %8, %10 : vector<128x256xf32>
    %12 = arith.addf %5, %11 : vector<128x256xf32>
    %c0_13 = arith.constant 0 : index
    %c512 = arith.constant 512 : index
    %13 = vector.load %arg3[%c0_13, %c512] : memref<256x768xbf16, #tpu.memory_space<vmem>>, vector<256x256xbf16>
    %c0_14 = arith.constant 0 : index
    %c0_15 = arith.constant 0 : index
    %14 = vector.load %arg2[%c0_14, %c0_15] : memref<128x512xbf16, #tpu.memory_space<vmem>>, vector<128x256xbf16>
    %cst_16 = arith.constant dense<0.000000e+00> : vector<128x256xf32>
    %15 = tpu.matmul %14, %13, %cst_16 {dimension_numbers = #tpu.dot_dimension_numbers<[1], [1], [0], [0], [0, 0, 1, 0], [], []>} : vector<128x256xbf16>, vector<256x256xbf16>, vector<128x256xf32> -> vector<128x256xf32>
    %c0_17 = arith.constant 0 : index
    %c256_18 = arith.constant 256 : index
    %16 = vector.load %arg2[%c0_17, %c256_18] : memref<128x512xbf16, #tpu.memory_space<vmem>>, vector<128x256xbf16>
    %cst_19 = arith.constant dense<0.000000e+00> : vector<128x256xf32>
    %17 = tpu.matmul %16, %13, %cst_19 {dimension_numbers = #tpu.dot_dimension_numbers<[1], [1], [0], [0], [0, 0, 1, 0], [], []>} : vector<128x256xbf16>, vector<256x256xbf16>, vector<128x256xf32> -> vector<128x256xf32>
    %18 = arith.maximumf %15, %17 : vector<128x256xf32>
    %19 = arith.addf %12, %18 : vector<128x256xf32>
    %c0_20 = arith.constant 0 : index
    %c0_21 = arith.constant 0 : index
    %20 = vector.load %arg4[%c0_20, %c0_21] : memref<128x256xf32, #tpu.memory_space<vmem>>, vector<128x256xf32>
    tpu.vector_store %arg4[%c0_20, %c0_21], %19 {strides = array<i32>} : memref<128x256xf32, #tpu.memory_space<vmem>>, vector<128x256xf32>,
    return
  }
  func.func @transform_0(%arg0: i32, %arg1: i32) -> (i32, i32) {
    %c0_i32 = arith.constant 0 : i32
    %c0_i32_0 = arith.constant 0 : i32
    return %arg0, %c0_i32 : i32, i32
  }
  func.func @transform_1(%arg0: i32, %arg1: i32) -> (i32, i32) {
    %c0_i32 = arith.constant 0 : i32
    %c0_i32_0 = arith.constant 0 : i32
    return %arg1, %c0_i32 : i32, i32
  }
  func.func @transform_2(%arg0: i32, %arg1: i32) -> (i32, i32) {
    %c0_i32 = arith.constant 0 : i32
    return %arg0, %arg1 : i32, i32
  }
}

</mosaic_0001>

<llo_original>
// kernel: tpu_custom_call.1
$region0: #{tpu_custom_call.1}
  #allocation0 [shape = 'u32[]', space=smem, size = 0x4, offset = 0x4, fixed_abs, tag = 'smem constant byte address 0x4 - core index']
  #allocation1 [shape = 'u32[144,128]{1,0:T(1,128)}', space=vmem, size = 0x12000, scoped, tag = 'internal scratch']
  %s0 = inlined_call_operand.hbm [shape: bf16[256,512], index: 0, kind: input, shape index: {}]
  %s1 = inlined_call_operand.hbm [shape: bf16[256,768], index: 1, kind: input, shape index: {}]
  %s2 = inlined_call_operand.hbm [shape: f32[256,256], index: 2, kind: output, shape index: {}]
  %s3 = sld [smem:[#allocation0]]
  $region49: #{tpu_custom_call.1} parent=0
    _
  %s5 = ssub.s32 1, %s3
  %s6 = scalar_select 0, %s5, %s3
  $region1: #{tpu_custom_call.1} parent=0
    #allocation2 [shape = 'u8[262144]{0}', space=vmem, size = 0x40000, scoped, tag = 'input window, operand 0']
    #allocation3 [shape = 's32[2]{0}', space=sflag, size = 0x8, scoped, tag = 'scoped memory for tpu_custom_call.1']
    #allocation4 [shape = 's32[2]{0}', space=sflag, size = 0x8, scoped, tag = 'scoped memory for tpu_custom_call.1']
    #allocation5 [shape = 'u8[393216]{0}', space=vmem, size = 0x60000, scoped, tag = 'input window, operand 1, single buffered']
    #allocation6 [shape = 's32[1]{0}', space=sflag, size = 0x4, scoped, tag = 'scoped memory for tpu_custom_call.1']
    #allocation7 [shape = 'u8[262144]{0}', space=vmem, size = 0x40000, scoped, tag = 'output window, operand 0']
    %7 = vsyncpa [#allocation3], 0
    %s8 = scalar_lea.sflag [#allocation3], 1
    %9 = vsyncpa %s8, 0
    %10 = vsyncpa [#allocation6], 0
    %11 = vsyncpa [#allocation4], 0
    %s12 = scalar_lea.sflag [#allocation4], 1
    %13 = vsyncpa %s12, 0
    loop: start=0, step=1, limit=4
    $region2: #{tpu_custom_call.1} parent=1 // loop_pre_header
      _
    $region3: #{tpu_custom_call.1} parent=1 // loop_header
      %s15 = sphi 0, %s19
      %p16 = scmp.ge.s32.totalorder %s15, 4
      %s22 = sphi 0, %s34
      %s23 = sphi 0, %s30
      %s24 = sphi 0, %s22
      %s25 = sphi 0, %s23
      %s26 = sphi 0, %s24
      %s27 = sphi 0, %s25
      %s37 = sphi 0, %s39
      %s40 = sphi 0, %s37
      %s41 = sphi 0, %s40
      %s57 = sphi 0, %s41
      %s63 = sphi 0, %s65
      %s66 = sphi 0, %s63
      %s67 = sphi 0, %s66
      %s83 = sphi 0, %s67
      %s91 = sphi 0, %s93
      %s94 = sphi 0, %s91
      %s95 = sphi 0, %s94
      %s111 = sphi 0, %s95
    $region4: #{tpu_custom_call.1} parent=1 // loop_header_branch
      %18 = sbr.rel (%p16) target = $region8
    $region5: #{tpu_custom_call.1} parent=1 // loop_body
      %s20 = ssub.s32 %s15, 1
      %s21 = ssub.s32 %s15, 2
      %s28 = sadd.s32 1, %s23
      %p29 = scmp.ge.s32.totalorder %s28, 1
      %s30 = scalar_select %p29, 0, %s28
      %s31 = sadd.s32 1, %s22
      %s32 = scalar_select %p29, %s31, %s22
      %p33 = scmp.ge.s32.totalorder %s32, 2
      %s34 = scalar_select %p33, 0, %s32
      %s35 = ssub.s32 %s22, %s34
      %p36 = scmp.eq.s32.totalorder %s35, 0
      %s38 = sadd.s32 %s37, 1
      %s39 = scalar_select %p36, %s37, %s38
      %p42 = pneg %p36
      %p43 = scmp.eq.s32.totalorder %s15, 1
      %p44 = por %p42, %p43
      %p45 = scmp.ne.s32.totalorder %s37, %s40
      %p46 = scmp.eq.s32.totalorder %s15, 0
      %p47 = por %p45, %p46
      %p48 = scmp.ne.s32.totalorder %s37, %s40
      %p49 = scmp.eq.s32.totalorder %s20, 1
      %p50 = por %p48, %p49
      %p51 = scmp.ne.s32.totalorder %s40, %s41
      %p52 = scmp.eq.s32.totalorder %s20, 0
      %p53 = por %p51, %p52
      %p54 = scmp.ne.s32.totalorder %s40, %s41
      %p55 = scmp.eq.s32.totalorder %s21, 1
      %p56 = por %p54, %p55
      %p58 = scmp.ne.s32.totalorder %s41, %s57
      %p59 = scmp.eq.s32.totalorder %s21, 0
      %p60 = por %p58, %p59
      %s61 = ssub.s32 %s23, %s30
      %p62 = scmp.eq.s32.totalorder %s61, 0
      %s64 = sadd.s32 %s63, 1
      %s65 = scalar_select %p62, %s63, %s64
      %p68 = pneg %p62
      %p69 = scmp.eq.s32.totalorder %s15, 1
      %p70 = por %p68, %p69
      %p71 = scmp.ne.s32.totalorder %s63, %s66
      %p72 = scmp.eq.s32.totalorder %s15, 0
      %p73 = por %p71, %p72
      %p74 = scmp.ne.s32.totalorder %s63, %s66
      %p75 = scmp.eq.s32.totalorder %s20, 1
      %p76 = por %p74, %p75
      %p77 = scmp.ne.s32.totalorder %s66, %s67
      %p78 = scmp.eq.s32.totalorder %s20, 0
      %p79 = por %p77, %p78
      %p80 = scmp.ne.s32.totalorder %s66, %s67
      %p81 = scmp.eq.s32.totalorder %s21, 1
      %p82 = por %p80, %p81
      %p84 = scmp.ne.s32.totalorder %s67, %s83
      %p85 = scmp.eq.s32.totalorder %s21, 0
      %p86 = por %p84, %p85
      %s87 = ssub.s32 %s22, %s34
      %s88 = ssub.s32 %s23, %s30
      %s89 = sor.u32 %s87, %s88
      %p90 = scmp.eq.s32.totalorder %s89, 0
      %s92 = sadd.s32 %s91, 1
      %s93 = scalar_select %p90, %s91, %s92
      %p96 = pneg %p90
      %p97 = scmp.eq.s32.totalorder %s15, 1
      %p98 = por %p96, %p97
      %p99 = scmp.ne.s32.totalorder %s91, %s94
      %p100 = scmp.eq.s32.totalorder %s15, 0
      %p101 = por %p99, %p100
      %p102 = scmp.ne.s32.totalorder %s91, %s94
      %p103 = scmp.eq.s32.totalorder %s20, 1
      %p104 = por %p102, %p103
      %p105 = scmp.ne.s32.totalorder %s94, %s95
      %p106 = scmp.eq.s32.totalorder %s20, 0
      %p107 = por %p105, %p106
      %p108 = scmp.ne.s32.totalorder %s94, %s95
      %p109 = scmp.eq.s32.totalorder %s21, 1
      %p110 = por %p108, %p109
      %p112 = scmp.ne.s32.totalorder %s95, %s111
      %p113 = scmp.eq.s32.totalorder %s21, 0
      %p114 = por %p112, %p113
      %p115 = scmp.le.s32.totalorder 1, %s15
      %p116 = scmp.lt.s32.totalorder %s15, 3
      %p117 = pnand %p115, %p116
      %p118 = pneg %p117
      // Predicated region
      $region9: #{tpu_custom_call.1} parent=5 // pred_check
        _
      $region10: #{tpu_custom_call.1} parent=5 // pred_check_branch
        %120 = sbr.rel (%p117) target = $region12
      $region11: #{tpu_custom_call.1} parent=5 // pred_region
        %s121 = ssub.s32 %s15, 1
        // Predicated region
        $region13: #{tpu_custom_call.1} parent=11 // pred_check
          %p122 = pneg %p79
        $region14: #{tpu_custom_call.1} parent=11 // pred_check_branch
          %124 = sbr.rel (%p122) target = $region16
        $region15: #{tpu_custom_call.1} parent=11 // pred_region
          %s125 = smul.u32 32, %s25
          %s127 = ssub.s32 12288, 12288
          %128 = vsyncadd [#allocation6], %s127
          %s129 = smul.addr %s125, 6
          %s130 = smul.addr %s129, 64
          %s131 = scalar_lea.hbm %s1, %s130
          %s132 = sshll.u32 [#allocation5], 4
          %s133 = int_to_ptr.vmem [resolvable:$true] %s132
          %138 = dma.hbm_to_vmem [thread:$0]  %s131, 12288, %s133, [#allocation6], 384, 384, 24
        $region16: #{tpu_custom_call.1} parent=11 // pred_fallthru
          _
      $region12: #{tpu_custom_call.1} parent=5 // pred_fallthru
        _
      %p139 = scmp.lt.s32.totalorder %s15, 2
      // Predicated region
      $region17: #{tpu_custom_call.1} parent=5 // pred_check
        %p140 = pneg %p139
      $region18: #{tpu_custom_call.1} parent=5 // pred_check_branch
        %142 = sbr.rel (%p140) target = $region20
      $region19: #{tpu_custom_call.1} parent=5 // pred_region
        // Predicated region
        $region21: #{tpu_custom_call.1} parent=19 // pred_check
          %p143 = pneg %p47
        $region22: #{tpu_custom_call.1} parent=19 // pred_check_branch
          %145 = sbr.rel (%p143) target = $region24
        $region23: #{tpu_custom_call.1} parent=19 // pred_region
          %s146 = sand.u32 %s37, 1
          %s147 = scalar_lea.sflag [#allocation3], %s146
          %s148 = sand.u32 %s37, 1
          %s149 = smul.addr %s148, 256
          %s150 = scalar_lea.vmem [#allocation2], %s149
          %s151 = smul.u32 16, %s22
          %s153 = ssub.s32 4096, 4096
          %154 = vsyncadd %s147, %s153
          %s155 = smul.addr %s151, 4
          %s156 = smul.addr %s155, 64
          %s157 = scalar_lea.hbm %s0, %s156
          %s158 = sshll.u32 %s150, 4
          %s159 = int_to_ptr.vmem [resolvable:$true] %s158
          %164 = dma.hbm_to_vmem [thread:$0]  %s157, 4096, %s159, %s147, 256, 256, 16
        $region24: #{tpu_custom_call.1} parent=19 // pred_fallthru
          _
      $region20: #{tpu_custom_call.1} parent=5 // pred_fallthru
        _
      %p165 = scmp.le.s32.totalorder 1, %s15
      %p166 = scmp.lt.s32.totalorder %s15, 3
      %p167 = pnand %p165, %p166
      %p168 = pneg %p167
      // Predicated region
      $region25: #{tpu_custom_call.1} parent=5 // pred_check
        _
      $region26: #{tpu_custom_call.1} parent=5 // pred_check_branch
        %170 = sbr.rel (%p167) target = $region28
      $region27: #{tpu_custom_call.1} parent=5 // pred_region
        %s171 = ssub.s32 %s15, 1
        %s172 = sand.u32 %s40, 1
        %s173 = scalar_lea.sflag [#allocation3], %s172
        %s174 = sand.u32 %s40, 1
        %s175 = smul.addr %s174, 256
        %s176 = scalar_lea.vmem [#allocation2], %s175
        // Predicated region
        $region29: #{tpu_custom_call.1} parent=27 // pred_check
          %p177 = pneg %p53
        $region30: #{tpu_custom_call.1} parent=27 // pred_check_branch
          %179 = sbr.rel (%p177) target = $region32
        $region31: #{tpu_custom_call.1} parent=27 // pred_region
          %180 = dma.done %s173, 4096
        $region32: #{tpu_custom_call.1} parent=27 // pred_fallthru
          _
        // Predicated region
        $region33: #{tpu_custom_call.1} parent=27 // pred_check
          %p181 = pneg %p79
        $region34: #{tpu_custom_call.1} parent=27 // pred_check_branch
          %183 = sbr.rel (%p181) target = $region36
        $region35: #{tpu_custom_call.1} parent=27 // pred_region
          %184 = dma.done [#allocation6], 12288
        $region36: #{tpu_custom_call.1} parent=27 // pred_fallthru
          _
        %s185 = sand.u32 %s40, 1
        %s186 = scalar_lea.sflag [#allocation3], %s185
        %s187 = sand.u32 %s40, 1
        %s188 = smul.addr %s187, 256
        %s189 = scalar_lea.vmem [#allocation2], %s188
        %p190 = pneg %p53
        %p191 = pneg %p50
        %p192 = pneg %p79
        %p193 = pneg %p76
        %p194 = pneg %p107
        %p195 = pneg %p104
        %s196 = sand.u32 %s94, 1
        %s197 = scalar_lea.sflag [#allocation4], %s196
        %s198 = sand.u32 %s94, 1
        %s199 = smul.addr %s198, 256
        %s200 = scalar_lea.vmem [#allocation7], %s199
        %s201 = smul.u32 16, %s24
        %s202 = smul.u32 32, %s25
        %s203 = smul.u32 16, %s24
        %s204 = smul.u32 2, %s25
        %v205 = vld [vmem:[#allocation5] sm:$0xff]
        %v206 = vld [vmem:[#allocation5 + $0x18] sm:$0xff]
        %v207 = vld [vmem:[#allocation5 + $0x30] sm:$0xff]
        %v208 = vld [vmem:[#allocation5 + $0x48] sm:$0xff]
        %v209 = vld [vmem:[#allocation5 + $0x60] sm:$0xff]
        %v210 = vld [vmem:[#allocation5 + $0x78] sm:$0xff]
        %v211 = vld [vmem:[#allocation5 + $0x90] sm:$0xff]
        %v212 = vld [vmem:[#allocation5 + $0xa8] sm:$0xff]
        %v213 = vld [vmem:[#allocation5 + $0xc0] sm:$0xff]
        %v214 = vld [vmem:[#allocation5 + $0xd8] sm:$0xff]
        %v215 = vld [vmem:[#allocation5 + $0xf0] sm:$0xff]
        %v216 = vld [vmem:[#allocation5 + $0x108] sm:$0xff]
        %v217 = vld [vmem:[#allocation5 + $0x120] sm:$0xff]
        %v218 = vld [vmem:[#allocation5 + $0x138] sm:$0xff]
        %v219 = vld [vmem:[#allocation5 + $0x150] sm:$0xff]
        %v220 = vld [vmem:[#allocation5 + $0x168] sm:$0xff]
        %v221 = vld [vmem:[#allocation5 + $0x180] sm:$0xff]
        %v222 = vld [vmem:[#allocation5 + $0x198] sm:$0xff]
        %v223 = vld [vmem:[#allocation5 + $0x1b0] sm:$0xff]
        %v224 = vld [vmem:[#allocation5 + $0x1c8] sm:$0xff]
        %v225 = vld [vmem:[#allocation5 + $0x1e0] sm:$0xff]
        %v226 = vld [vmem:[#allocation5 + $0x1f8] sm:$0xff]
        %v227 = vld [vmem:[#allocation5 + $0x210] sm:$0xff]
        %v228 = vld [vmem:[#allocation5 + $0x228] sm:$0xff]
        %v229 = vld [vmem:[#allocation5 + $0x240] sm:$0xff]
        %v230 = vld [vmem:[#allocation5 + $0x258] sm:$0xff]
        %v231 = vld [vmem:[#allocation5 + $0x270] sm:$0xff]
        %v232 = vld [vmem:[#allocation5 + $0x288] sm:$0xff]
        %v233 = vld [vmem:[#allocation5 + $0x2a0] sm:$0xff]
        %v234 = vld [vmem:[#allocation5 + $0x2b8] sm:$0xff]
        %v235 = vld [vmem:[#allocation5 + $0x2d0] sm:$0xff]
        %v236 = vld [vmem:[#allocation5 + $0x2e8] sm:$0xff]
        %v237 = vld [vmem:[%s176] sm:$0xff]
        %v238 = vld [vmem:[%s176 + $0x10] sm:$0xff]
        %v239 = vld [vmem:[%s176 + $0x20] sm:$0xff]
        %v240 = vld [vmem:[%s176 + $0x30] sm:$0xff]
        %v241 = vld [vmem:[%s176 + $0x40] sm:$0xff]
        %v242 = vld [vmem:[%s176 + $0x50] sm:$0xff]
        %v243 = vld [vmem:[%s176 + $0x60] sm:$0xff]
        %v244 = vld [vmem:[%s176 + $0x70] sm:$0xff]
        %v245 = vld [vmem:[%s176 + $0x80] sm:$0xff]
        %v246 = vld [vmem:[%s176 + $0x90] sm:$0xff]
        %v247 = vld [vmem:[%s176 + $0xa0] sm:$0xff]
        %v248 = vld [vmem:[%s176 + $0xb0] sm:$0xff]
        %v249 = vld [vmem:[%s176 + $0xc0] sm:$0xff]
        %v250 = vld [vmem:[%s176 + $0xd0] sm:$0xff]
        %v251 = vld [vmem:[%s176 + $0xe0] sm:$0xff]
        %v252 = vld [vmem:[%s176 + $0xf0] sm:$0xff]
        %v269 = vunpack.c.l.b16 %v237
        %v270 = vunpack.c.h.b16 %v237
        %v271 = vunpack.c.l.b16 %v238
        %v272 = vunpack.c.h.b16 %v238
        %v273 = vunpack.c.l.b16 %v239
        %v274 = vunpack.c.h.b16 %v239
        %v275 = vunpack.c.l.b16 %v240
        %v276 = vunpack.c.h.b16 %v240
        %v277 = vunpack.c.l.b16 %v241
        %v278 = vunpack.c.h.b16 %v241
        %v279 = vunpack.c.l.b16 %v242
        %v280 = vunpack.c.h.b16 %v242
        %v281 = vunpack.c.l.b16 %v243
        %v282 = vunpack.c.h.b16 %v243
        %v283 = vunpack.c.l.b16 %v244
        %v284 = vunpack.c.h.b16 %v244
        %v285 = vunpack.c.l.b16 %v245
        %v286 = vunpack.c.h.b16 %v245
        %v287 = vunpack.c.l.b16 %v246
        %v288 = vunpack.c.h.b16 %v246
        %v289 = vunpack.c.l.b16 %v247
        %v290 = vunpack.c.h.b16 %v247
        %v291 = vunpack.c.l.b16 %v248
        %v292 = vunpack.c.h.b16 %v248
        %v293 = vunpack.c.l.b16 %v249
        %v294 = vunpack.c.h.b16 %v249
        %v295 = vunpack.c.l.b16 %v250
        %v296 = vunpack.c.h.b16 %v250
        %v297 = vunpack.c.l.b16 %v251
        %v298 = vunpack.c.h.b16 %v251
        %v299 = vunpack.c.l.b16 %v252
        %v300 = vunpack.c.h.b16 %v252
        %v301 = vpack.c.b16 %v271, %v269
        %v302 = vpack.c.b16 %v272, %v270
        %v303 = vpack.c.b16 %v275, %v273
        %v304 = vpack.c.b16 %v276, %v274
        %v305 = vpack.c.b16 %v279, %v277
        %v306 = vpack.c.b16 %v280, %v278
        %v307 = vpack.c.b16 %v283, %v281
        %v308 = vpack.c.b16 %v284, %v282
        %v309 = vpack.c.b16 %v287, %v285
        %v310 = vpack.c.b16 %v288, %v286
        %v311 = vpack.c.b16 %v291, %v289
        %v312 = vpack.c.b16 %v292, %v290
        %v313 = vpack.c.b16 %v295, %v293
        %v314 = vpack.c.b16 %v296, %v294
        %v315 = vpack.c.b16 %v299, %v297
        %v316 = vpack.c.b16 %v300, %v298
        %v365 = vunpack.c.l.b16 %v205
        %v366 = vunpack.c.h.b16 %v205
        %v367 = vunpack.c.l.b16 %v206
        %v368 = vunpack.c.h.b16 %v206
        %v369 = vunpack.c.l.b16 %v207
        %v370 = vunpack.c.h.b16 %v207
        %v371 = vunpack.c.l.b16 %v208
        %v372 = vunpack.c.h.b16 %v208
        %v373 = vunpack.c.l.b16 %v209
        %v374 = vunpack.c.h.b16 %v209
        %v375 = vunpack.c.l.b16 %v210
        %v376 = vunpack.c.h.b16 %v210
        %v377 = vunpack.c.l.b16 %v211
        %v378 = vunpack.c.h.b16 %v211
        %v379 = vunpack.c.l.b16 %v212
        %v380 = vunpack.c.h.b16 %v212
        %v381 = vunpack.c.l.b16 %v213
        %v382 = vunpack.c.h.b16 %v213
        %v383 = vunpack.c.l.b16 %v214
        %v384 = vunpack.c.h.b16 %v214
        %v385 = vunpack.c.l.b16 %v215
        %v386 = vunpack.c.h.b16 %v215
        %v387 = vunpack.c.l.b16 %v216
        %v388 = vunpack.c.h.b16 %v216
        %v389 = vunpack.c.l.b16 %v217
        %v390 = vunpack.c.h.b16 %v217
        %v391 = vunpack.c.l.b16 %v218
        %v392 = vunpack.c.h.b16 %v218
        %v393 = vunpack.c.l.b16 %v219
        %v394 = vunpack.c.h.b16 %v219
        %v395 = vunpack.c.l.b16 %v220
        %v396 = vunpack.c.h.b16 %v220
        %v397 = vunpack.c.l.b16 %v221
        %v398 = vunpack.c.h.b16 %v221
        %v399 = vunpack.c.l.b16 %v222
        %v400 = vunpack.c.h.b16 %v222
        %v401 = vunpack.c.l.b16 %v223
        %v402 = vunpack.c.h.b16 %v223
        %v403 = vunpack.c.l.b16 %v224
        %v404 = vunpack.c.h.b16 %v224
        %v405 = vunpack.c.l.b16 %v225
        %v406 = vunpack.c.h.b16 %v225
        %v407 = vunpack.c.l.b16 %v226
        %v408 = vunpack.c.h.b16 %v226
        %v409 = vunpack.c.l.b16 %v227
        %v410 = vunpack.c.h.b16 %v227
        %v411 = vunpack.c.l.b16 %v228
        %v412 = vunpack.c.h.b16 %v228
        %v413 = vunpack.c.l.b16 %v229
        %v414 = vunpack.c.h.b16 %v229
        %v415 = vunpack.c.l.b16 %v230
        %v416 = vunpack.c.h.b16 %v230
        %v417 = vunpack.c.l.b16 %v231
        %v418 = vunpack.c.h.b16 %v231
        %v419 = vunpack.c.l.b16 %v232
        %v420 = vunpack.c.h.b16 %v232
        %v421 = vunpack.c.l.b16 %v233
        %v422 = vunpack.c.h.b16 %v233
        %v423 = vunpack.c.l.b16 %v234
        %v424 = vunpack.c.h.b16 %v234
        %v425 = vunpack.c.l.b16 %v235
        %v426 = vunpack.c.h.b16 %v235
        %v427 = vunpack.c.l.b16 %v236
        %v428 = vunpack.c.h.b16 %v236
        %v429 = vpack.c.b16 %v367, %v365
        %v430 = vpack.c.b16 %v368, %v366
        %v431 = vpack.c.b16 %v371, %v369
        %v432 = vpack.c.b16 %v372, %v370
        %v433 = vpack.c.b16 %v375, %v373
        %v434 = vpack.c.b16 %v376, %v374
        %v435 = vpack.c.b16 %v379, %v377
        %v436 = vpack.c.b16 %v380, %v378
        %v437 = vpack.c.b16 %v383, %v381
        %v438 = vpack.c.b16 %v384, %v382
        %v439 = vpack.c.b16 %v387, %v385
        %v440 = vpack.c.b16 %v388, %v386
        %v441 = vpack.c.b16 %v391, %v389
        %v442 = vpack.c.b16 %v392, %v390
        %v443 = vpack.c.b16 %v395, %v393
        %v444 = vpack.c.b16 %v396, %v394
        %v445 = vpack.c.b16 %v399, %v397
        %v446 = vpack.c.b16 %v400, %v398
        %v447 = vpack.c.b16 %v403, %v401
        %v448 = vpack.c.b16 %v404, %v402
        %v449 = vpack.c.b16 %v407, %v405
        %v450 = vpack.c.b16 %v408, %v406
        %v451 = vpack.c.b16 %v411, %v409
        %v452 = vpack.c.b16 %v412, %v410
        %v453 = vpack.c.b16 %v415, %v413
        %v454 = vpack.c.b16 %v416, %v414
        %v455 = vpack.c.b16 %v419, %v417
        %v456 = vpack.c.b16 %v420, %v418
        %v457 = vpack.c.b16 %v423, %v421
        %v458 = vpack.c.b16 %v424, %v422
        %v459 = vpack.c.b16 %v427, %v425
        %v460 = vpack.c.b16 %v428, %v426
        %493 = vmatprep.subr.bf16.mxu0 %v444
        %494 = vmatpush1.bf16.xpose.msra.mxu0 %v443
        %495 = vmatprep.subr.bf16.mxu0 %v442
        %496 = vmatpush1.bf16.xpose.msra.mxu0 %v441
        %497 = vmatprep.subr.bf16.mxu0 %v440
        %498 = vmatpush1.bf16.xpose.msra.mxu0 %v439
        %499 = vmatprep.subr.bf16.mxu0 %v438
        %500 = vmatpush1.bf16.xpose.msra.mxu0 %v437
        %501 = vmatprep.subr.bf16.mxu0 %v436
        %502 = vmatpush1.bf16.xpose.msra.mxu0 %v435
        %503 = vmatprep.subr.bf16.mxu0 %v434
        %504 = vmatpush1.bf16.xpose.msra.mxu0 %v433
        %505 = vmatprep.subr.bf16.mxu0 %v432
        %506 = vmatpush1.bf16.xpose.msra.mxu0 %v431
        %507 = vmatprep.subr.bf16.mxu0 %v430
        %508 = vmatpush1.bf16.xpose.msra.mxu0 %v429
        %509 = vmatprep.subr.bf16.mxu0 %v460
        %510 = vmatpush2.bf16.xpose.msra.mxu0 %v459
        %511 = vmatprep.subr.bf16.mxu0 %v458
        %512 = vmatpush2.bf16.xpose.msra.mxu0 %v457
        %513 = vmatprep.subr.bf16.mxu0 %v456
        %514 = vmatpush2.bf16.xpose.msra.mxu0 %v455
        %515 = vmatprep.subr.bf16.mxu0 %v454
        %516 = vmatpush2.bf16.xpose.msra.mxu0 %v453
        %517 = vmatprep.subr.bf16.mxu0 %v452
        %518 = vmatpush2.bf16.xpose.msra.mxu0 %v451
        %519 = vmatprep.subr.bf16.mxu0 %v450
        %520 = vmatpush2.bf16.xpose.msra.mxu0 %v449
        %521 = vmatprep.subr.bf16.mxu0 %v448
        %522 = vmatpush2.bf16.xpose.msra.mxu0 %v447
        %523 = vmatprep.subr.bf16.mxu0 %v446
        %524 = vmatpush2.bf16.xpose.msra.mxu0 %v445
        %525 = vmatprep.mubr.bf16.mxu0 %v302
        %526 = vmatmul.mubr.bf16.gmra.mxu0 %v301
        %v527 = vpop.f32.mrf.mxu0
        %v528 = vadd.f32 0.0, %v527
        %v529 = vpop.f32.mrf.mxu0
        %v530 = vadd.f32 0.0, %v529
        %v531 = vpop.f32.mrf.mxu0
        %v532 = vadd.f32 0.0, %v531
        %v533 = vpop.f32.mrf.mxu0
        %v534 = vadd.f32 0.0, %v533
        %535 = vmatprep.mubr.bf16.mxu0 %v304
        %536 = vmatmul.mubr.bf16.gmra.mxu0 %v303
        %v537 = vpop.f32.mrf.mxu0
        %v538 = vadd.f32 0.0, %v537
        %v539 = vpop.f32.mrf.mxu0
        %v540 = vadd.f32 0.0, %v539
        %v541 = vpop.f32.mrf.mxu0
        %v542 = vadd.f32 0.0, %v541
        %v543 = vpop.f32.mrf.mxu0
        %v544 = vadd.f32 0.0, %v543
        %545 = vmatprep.mubr.bf16.mxu0 %v306
        %546 = vmatmul.mubr.bf16.gmra.mxu0 %v305
        %v547 = vpop.f32.mrf.mxu0
        %v548 = vadd.f32 0.0, %v547
        %v549 = vpop.f32.mrf.mxu0
        %v550 = vadd.f32 0.0, %v549
        %v551 = vpop.f32.mrf.mxu0
        %v552 = vadd.f32 0.0, %v551
        %v553 = vpop.f32.mrf.mxu0
        %v554 = vadd.f32 0.0, %v553
        %555 = vmatprep.mubr.bf16.mxu0 %v308
        %556 = vmatmul.mubr.bf16.gmra.mxu0 %v307
        %v557 = vpop.f32.mrf.mxu0
        %v558 = vadd.f32 0.0, %v557
        %v559 = vpop.f32.mrf.mxu0
        %v560 = vadd.f32 0.0, %v559
        %v561 = vpop.f32.mrf.mxu0
        %v562 = vadd.f32 0.0, %v561
        %v563 = vpop.f32.mrf.mxu0
        %v564 = vadd.f32 0.0, %v563
        %565 = vmatprep.mubr.bf16.mxu0 %v310
        %566 = vmatmul.mubr.bf16.gmra.mxu0 %v309
        %v567 = vpop.f32.mrf.mxu0
        %v568 = vadd.f32 0.0, %v567
        %v569 = vpop.f32.mrf.mxu0
        %v570 = vadd.f32 0.0, %v569
        %v571 = vpop.f32.mrf.mxu0
        %v572 = vadd.f32 0.0, %v571
        %v573 = vpop.f32.mrf.mxu0
        %v574 = vadd.f32 0.0, %v573
        %575 = vmatprep.mubr.bf16.mxu0 %v312
        %576 = vmatmul.mubr.bf16.gmra.mxu0 %v311
        %v577 = vpop.f32.mrf.mxu0
        %v578 = vadd.f32 0.0, %v577
        %v579 = vpop.f32.mrf.mxu0
        %v580 = vadd.f32 0.0, %v579
        %v581 = vpop.f32.mrf.mxu0
        %v582 = vadd.f32 0.0, %v581
        %v583 = vpop.f32.mrf.mxu0
        %v584 = vadd.f32 0.0, %v583
        %585 = vmatprep.mubr.bf16.mxu0 %v314
        %586 = vmatmul.mubr.bf16.gmra.mxu0 %v313
        %v587 = vpop.f32.mrf.mxu0
        %v588 = vadd.f32 0.0, %v587
        %v589 = vpop.f32.mrf.mxu0
        %v590 = vadd.f32 0.0, %v589
        %v591 = vpop.f32.mrf.mxu0
        %v592 = vadd.f32 0.0, %v591
        %v593 = vpop.f32.mrf.mxu0
        %v594 = vadd.f32 0.0, %v593
        %595 = vmatprep.mubr.bf16.mxu0 %v316
        %596 = vmatmul.mubr.bf16.gmra.mxu0 %v315
        %v597 = vpop.f32.mrf.mxu0
        %v598 = vadd.f32 0.0, %v597
        %v599 = vpop.f32.mrf.mxu0
        %v600 = vadd.f32 0.0, %v599
        %v601 = vpop.f32.mrf.mxu0
        %v602 = vadd.f32 0.0, %v601
        %v603 = vpop.f32.mrf.mxu0
        %v604 = vadd.f32 0.0, %v603
        %605 = vdwg.mxu0
        %v606 = vld [vmem:[%s176 + $0x8] sm:$0xff]
        %v607 = vld [vmem:[%s176 + $0x18] sm:$0xff]
        %v608 = vld [vmem:[%s176 + $0x28] sm:$0xff]
        %v609 = vld [vmem:[%s176 + $0x38] sm:$0xff]
        %v610 = vld [vmem:[%s176 + $0x48] sm:$0xff]
        %v611 = vld [vmem:[%s176 + $0x58] sm:$0xff]
        %v612 = vld [vmem:[%s176 + $0x68] sm:$0xff]
        %v613 = vld [vmem:[%s176 + $0x78] sm:$0xff]
        %v614 = vld [vmem:[%s176 + $0x88] sm:$0xff]
        %v615 = vld [vmem:[%s176 + $0x98] sm:$0xff]
        %v616 = vld [vmem:[%s176 + $0xa8] sm:$0xff]
        %v617 = vld [vmem:[%s176 + $0xb8] sm:$0xff]
        %v618 = vld [vmem:[%s176 + $0xc8] sm:$0xff]
        %v619 = vld [vmem:[%s176 + $0xd8] sm:$0xff]
        %v620 = vld [vmem:[%s176 + $0xe8] sm:$0xff]
        %v621 = vld [vmem:[%s176 + $0xf8] sm:$0xff]
        %v638 = vunpack.c.l.b16 %v606
        %v639 = vunpack.c.h.b16 %v606
        %v640 = vunpack.c.l.b16 %v607
        %v641 = vunpack.c.h.b16 %v607
        %v642 = vunpack.c.l.b16 %v608
        %v643 = vunpack.c.h.b16 %v608
        %v644 = vunpack.c.l.b16 %v609
        %v645 = vunpack.c.h.b16 %v609
        %v646 = vunpack.c.l.b16 %v610
        %v647 = vunpack.c.h.b16 %v610
        %v648 = vunpack.c.l.b16 %v611
        %v649 = vunpack.c.h.b16 %v611
        %v650 = vunpack.c.l.b16 %v612
        %v651 = vunpack.c.h.b16 %v612
        %v652 = vunpack.c.l.b16 %v613
        %v653 = vunpack.c.h.b16 %v613
        %v654 = vunpack.c.l.b16 %v614
        %v655 = vunpack.c.h.b16 %v614
        %v656 = vunpack.c.l.b16 %v615
        %v657 = vunpack.c.h.b16 %v615
        %v658 = vunpack.c.l.b16 %v616
        %v659 = vunpack.c.h.b16 %v616
        %v660 = vunpack.c.l.b16 %v617
        %v661 = vunpack.c.h.b16 %v617
        %v662 = vunpack.c.l.b16 %v618
        %v663 = vunpack.c.h.b16 %v618
        %v664 = vunpack.c.l.b16 %v619
        %v665 = vunpack.c.h.b16 %v619
        %v666 = vunpack.c.l.b16 %v620
        %v667 = vunpack.c.h.b16 %v620
        %v668 = vunpack.c.l.b16 %v621
        %v669 = vunpack.c.h.b16 %v621
        %v670 = vpack.c.b16 %v640, %v638
        %v671 = vpack.c.b16 %v641, %v639
        %v672 = vpack.c.b16 %v644, %v642
        %v673 = vpack.c.b16 %v645, %v643
        %v674 = vpack.c.b16 %v648, %v646
        %v675 = vpack.c.b16 %v649, %v647
        %v676 = vpack.c.b16 %v652, %v650
        %v677 = vpack.c.b16 %v653, %v651
        %v678 = vpack.c.b16 %v656, %v654
        %v679 = vpack.c.b16 %v657, %v655
        %v680 = vpack.c.b16 %v660, %v658
        %v681 = vpack.c.b16 %v661, %v659
        %v682 = vpack.c.b16 %v664, %v662
        %v683 = vpack.c.b16 %v665, %v663
        %v684 = vpack.c.b16 %v668, %v666
        %v685 = vpack.c.b16 %v669, %v667
        %702 = vmatprep.subr.bf16.mxu0 %v444
        %703 = vmatpush1.bf16.xpose.msra.mxu0 %v443
        %704 = vmatprep.subr.bf16.mxu0 %v442
        %705 = vmatpush1.bf16.xpose.msra.mxu0 %v441
        %706 = vmatprep.subr.bf16.mxu0 %v440
        %707 = vmatpush1.bf16.xpose.msra.mxu0 %v439
        %708 = vmatprep.subr.bf16.mxu0 %v438
        %709 = vmatpush1.bf16.xpose.msra.mxu0 %v437
        %710 = vmatprep.subr.bf16.mxu0 %v436
        %711 = vmatpush1.bf16.xpose.msra.mxu0 %v435
        %712 = vmatprep.subr.bf16.mxu0 %v434
        %713 = vmatpush1.bf16.xpose.msra.mxu0 %v433
        %714 = vmatprep.subr.bf16.mxu0 %v432
        %715 = vmatpush1.bf16.xpose.msra.mxu0 %v431
        %716 = vmatprep.subr.bf16.mxu0 %v430
        %717 = vmatpush1.bf16.xpose.msra.mxu0 %v429
        %718 = vmatprep.subr.bf16.mxu0 %v460
        %719 = vmatpush2.bf16.xpose.msra.mxu0 %v459
        %720 = vmatprep.subr.bf16.mxu0 %v458
        %721 = vmatpush2.bf16.xpose.msra.mxu0 %v457
        %722 = vmatprep.subr.bf16.mxu0 %v456
        %723 = vmatpush2.bf16.xpose.msra.mxu0 %v455
        %724 = vmatprep.subr.bf16.mxu0 %v454
        %725 = vmatpush2.bf16.xpose.msra.mxu0 %v453
        %726 = vmatprep.subr.bf16.mxu0 %v452
        %727 = vmatpush2.bf16.xpose.msra.mxu0 %v451
        %728 = vmatprep.subr.bf16.mxu0 %v450
        %729 = vmatpush2.bf16.xpose.msra.mxu0 %v449
        %730 = vmatprep.subr.bf16.mxu0 %v448
        %731 = vmatpush2.bf16.xpose.msra.mxu0 %v447
        %732 = vmatprep.subr.bf16.mxu0 %v446
        %733 = vmatpush2.bf16.xpose.msra.mxu0 %v445
        %734 = vmatprep.mubr.bf16.mxu0 %v671
        %735 = vmatmul.mubr.bf16.gmra.mxu0 %v670
        %v736 = vpop.f32.mrf.mxu0
        %v737 = vadd.f32 0.0, %v736
        %v738 = vpop.f32.mrf.mxu0
        %v739 = vadd.f32 0.0, %v738
        %v740 = vpop.f32.mrf.mxu0
        %v741 = vadd.f32 0.0, %v740
        %v742 = vpop.f32.mrf.mxu0
        %v743 = vadd.f32 0.0, %v742
        %744 = vmatprep.mubr.bf16.mxu0 %v673
        %745 = vmatmul.mubr.bf16.gmra.mxu0 %v672
        %v746 = vpop.f32.mrf.mxu0
        %v747 = vadd.f32 0.0, %v746
        %v748 = vpop.f32.mrf.mxu0
        %v749 = vadd.f32 0.0, %v748
        %v750 = vpop.f32.mrf.mxu0
        %v751 = vadd.f32 0.0, %v750
        %v752 = vpop.f32.mrf.mxu0
        %v753 = vadd.f32 0.0, %v752
        %754 = vmatprep.mubr.bf16.mxu0 %v675
        %755 = vmatmul.mubr.bf16.gmra.mxu0 %v674
        %v756 = vpop.f32.mrf.mxu0
        %v757 = vadd.f32 0.0, %v756
        %v758 = vpop.f32.mrf.mxu0
        %v759 = vadd.f32 0.0, %v758
        %v760 = vpop.f32.mrf.mxu0
        %v761 = vadd.f32 0.0, %v760
        %v762 = vpop.f32.mrf.mxu0
        %v763 = vadd.f32 0.0, %v762
        %764 = vmatprep.mubr.bf16.mxu0 %v677
        %765 = vmatmul.mubr.bf16.gmra.mxu0 %v676
        %v766 = vpop.f32.mrf.mxu0
        %v767 = vadd.f32 0.0, %v766
        %v768 = vpop.f32.mrf.mxu0
        %v769 = vadd.f32 0.0, %v768
        %v770 = vpop.f32.mrf.mxu0
        %v771 = vadd.f32 0.0, %v770
        %v772 = vpop.f32.mrf.mxu0
        %v773 = vadd.f32 0.0, %v772
        %774 = vmatprep.mubr.bf16.mxu0 %v679
        %775 = vmatmul.mubr.bf16.gmra.mxu0 %v678
        %v776 = vpop.f32.mrf.mxu0
        %v777 = vadd.f32 0.0, %v776
        %v778 = vpop.f32.mrf.mxu0
        %v779 = vadd.f32 0.0, %v778
        %v780 = vpop.f32.mrf.mxu0
        %v781 = vadd.f32 0.0, %v780
        %v782 = vpop.f32.mrf.mxu0
        %v783 = vadd.f32 0.0, %v782
        %784 = vmatprep.mubr.bf16.mxu0 %v681
        %785 = vmatmul.mubr.bf16.gmra.mxu0 %v680
        %v786 = vpop.f32.mrf.mxu0
        %v787 = vadd.f32 0.0, %v786
        %v788 = vpop.f32.mrf.mxu0
        %v789 = vadd.f32 0.0, %v788
        %v790 = vpop.f32.mrf.mxu0
        %v791 = vadd.f32 0.0, %v790
        %v792 = vpop.f32.mrf.mxu0
        %v793 = vadd.f32 0.0, %v792
        %794 = vmatprep.mubr.bf16.mxu0 %v683
        %795 = vmatmul.mubr.bf16.gmra.mxu0 %v682
        %v796 = vpop.f32.mrf.mxu0
        %v797 = vadd.f32 0.0, %v796
        %v798 = vpop.f32.mrf.mxu0
        %v799 = vadd.f32 0.0, %v798
        %v800 = vpop.f32.mrf.mxu0
        %v801 = vadd.f32 0.0, %v800
        %v802 = vpop.f32.mrf.mxu0
        %v803 = vadd.f32 0.0, %v802
        %804 = vmatprep.mubr.bf16.mxu0 %v685
        %805 = vmatmul.mubr.bf16.gmra.mxu0 %v684
        %v806 = vpop.f32.mrf.mxu0
        %v807 = vadd.f32 0.0, %v806
        %v808 = vpop.f32.mrf.mxu0
        %v809 = vadd.f32 0.0, %v808
        %v810 = vpop.f32.mrf.mxu0
        %v811 = vadd.f32 0.0, %v810
        %v812 = vpop.f32.mrf.mxu0
        %v813 = vadd.f32 0.0, %v812
        %814 = vdwg.mxu0
        %v815 = vmax.f32 %v528, %v737
        %v816 = vmax.f32 %v530, %v739
        %v817 = vmax.f32 %v532, %v741
        %v818 = vmax.f32 %v534, %v743
        %v819 = vmax.f32 %v538, %v747
        %v820 = vmax.f32 %v540, %v749
        %v821 = vmax.f32 %v542, %v751
        %v822 = vmax.f32 %v544, %v753
        %v823 = vmax.f32 %v548, %v757
        %v824 = vmax.f32 %v550, %v759
        %v825 = vmax.f32 %v552, %v761
        %v826 = vmax.f32 %v554, %v763
        %v827 = vmax.f32 %v558, %v767
        %v828 = vmax.f32 %v560, %v769
        %v829 = vmax.f32 %v562, %v771
        %v830 = vmax.f32 %v564, %v773
        %v831 = vmax.f32 %v568, %v777
        %v832 = vmax.f32 %v570, %v779
        %v833 = vmax.f32 %v572, %v781
        %v834 = vmax.f32 %v574, %v783
        %v835 = vmax.f32 %v578, %v787
        %v836 = vmax.f32 %v580, %v789
        %v837 = vmax.f32 %v582, %v791
        %v838 = vmax.f32 %v584, %v793
        %v839 = vmax.f32 %v588, %v797
        %v840 = vmax.f32 %v590, %v799
        %v841 = vmax.f32 %v592, %v801
        %v842 = vmax.f32 %v594, %v803
        %v843 = vmax.f32 %v598, %v807
        %v844 = vmax.f32 %v600, %v809
        %v845 = vmax.f32 %v602, %v811
        %v846 = vmax.f32 %v604, %v813
        %v847 = vld [vmem:[#allocation5 + $0x8] sm:$0xff]
        %v848 = vld [vmem:[#allocation5 + $0x20] sm:$0xff]
        %v849 = vld [vmem:[#allocation5 + $0x38] sm:$0xff]
        %v850 = vld [vmem:[#allocation5 + $0x50] sm:$0xff]
        %v851 = vld [vmem:[#allocation5 + $0x68] sm:$0xff]
        %v852 = vld [vmem:[#allocation5 + $0x80] sm:$0xff]
        %v853 = vld [vmem:[#allocation5 + $0x98] sm:$0xff]
        %v854 = vld [vmem:[#allocation5 + $0xb0] sm:$0xff]
        %v855 = vld [vmem:[#allocation5 + $0xc8] sm:$0xff]
        %v856 = vld [vmem:[#allocation5 + $0xe0] sm:$0xff]
        %v857 = vld [vmem:[#allocation5 + $0xf8] sm:$0xff]
        %v858 = vld [vmem:[#allocation5 + $0x110] sm:$0xff]
        %v859 = vld [vmem:[#allocation5 + $0x128] sm:$0xff]
        %v860 = vld [vmem:[#allocation5 + $0x140] sm:$0xff]
        %v861 = vld [vmem:[#allocation5 + $0x158] sm:$0xff]
        %v862 = vld [vmem:[#allocation5 + $0x170] sm:$0xff]
        %v863 = vld [vmem:[#allocation5 + $0x188] sm:$0xff]
        %v864 = vld [vmem:[#allocation5 + $0x1a0] sm:$0xff]
        %v865 = vld [vmem:[#allocation5 + $0x1b8] sm:$0xff]
        %v866 = vld [vmem:[#allocation5 + $0x1d0] sm:$0xff]
        %v867 = vld [vmem:[#allocation5 + $0x1e8] sm:$0xff]
        %v868 = vld [vmem:[#allocation5 + $0x200] sm:$0xff]
        %v869 = vld [vmem:[#allocation5 + $0x218] sm:$0xff]
        %v870 = vld [vmem:[#allocation5 + $0x230] sm:$0xff]
        %v871 = vld [vmem:[#allocation5 + $0x248] sm:$0xff]
        %v872 = vld [vmem:[#allocation5 + $0x260] sm:$0xff]
        %v873 = vld [vmem:[#allocation5 + $0x278] sm:$0xff]
        %v874 = vld [vmem:[#allocation5 + $0x290] sm:$0xff]
        %v875 = vld [vmem:[#allocation5 + $0x2a8] sm:$0xff]
        %v876 = vld [vmem:[#allocation5 + $0x2c0] sm:$0xff]
        %v877 = vld [vmem:[#allocation5 + $0x2d8] sm:$0xff]
        %v878 = vld [vmem:[#allocation5 + $0x2f0] sm:$0xff]
        %v911 = vunpack.c.l.b16 %v847
        %v912 = vunpack.c.h.b16 %v847
        %v913 = vunpack.c.l.b16 %v848
        %v914 = vunpack.c.h.b16 %v848
        %v915 = vunpack.c.l.b16 %v849
        %v916 = vunpack.c.h.b16 %v849
        %v917 = vunpack.c.l.b16 %v850
        %v918 = vunpack.c.h.b16 %v850
        %v919 = vunpack.c.l.b16 %v851
        %v920 = vunpack.c.h.b16 %v851
        %v921 = vunpack.c.l.b16 %v852
        %v922 = vunpack.c.h.b16 %v852
        %v923 = vunpack.c.l.b16 %v853
        %v924 = vunpack.c.h.b16 %v853
        %v925 = vunpack.c.l.b16 %v854
        %v926 = vunpack.c.h.b16 %v854
        %v927 = vunpack.c.l.b16 %v855
        %v928 = vunpack.c.h.b16 %v855
        %v929 = vunpack.c.l.b16 %v856
        %v930 = vunpack.c.h.b16 %v856
        %v931 = vunpack.c.l.b16 %v857
        %v932 = vunpack.c.h.b16 %v857
        %v933 = vunpack.c.l.b16 %v858
        %v934 = vunpack.c.h.b16 %v858
        %v935 = vunpack.c.l.b16 %v859
        %v936 = vunpack.c.h.b16 %v859
        %v937 = vunpack.c.l.b16 %v860
        %v938 = vunpack.c.h.b16 %v860
        %v939 = vunpack.c.l.b16 %v861
        %v940 = vunpack.c.h.b16 %v861
        %v941 = vunpack.c.l.b16 %v862
        %v942 = vunpack.c.h.b16 %v862
        %v943 = vunpack.c.l.b16 %v863
        %v944 = vunpack.c.h.b16 %v863
        %v945 = vunpack.c.l.b16 %v864
        %v946 = vunpack.c.h.b16 %v864
        %v947 = vunpack.c.l.b16 %v865
        %v948 = vunpack.c.h.b16 %v865
        %v949 = vunpack.c.l.b16 %v866
        %v950 = vunpack.c.h.b16 %v866
        %v951 = vunpack.c.l.b16 %v867
        %v952 = vunpack.c.h.b16 %v867
        %v953 = vunpack.c.l.b16 %v868
        %v954 = vunpack.c.h.b16 %v868
        %v955 = vunpack.c.l.b16 %v869
        %v956 = vunpack.c.h.b16 %v869
        %v957 = vunpack.c.l.b16 %v870
        %v958 = vunpack.c.h.b16 %v870
        %v959 = vunpack.c.l.b16 %v871
        %v960 = vunpack.c.h.b16 %v871
        %v961 = vunpack.c.l.b16 %v872
        %v962 = vunpack.c.h.b16 %v872
        %v963 = vunpack.c.l.b16 %v873
        %v964 = vunpack.c.h.b16 %v873
        %v965 = vunpack.c.l.b16 %v874
        %v966 = vunpack.c.h.b16 %v874
        %v967 = vunpack.c.l.b16 %v875
        %v968 = vunpack.c.h.b16 %v875
        %v969 = vunpack.c.l.b16 %v876
        %v970 = vunpack.c.h.b16 %v876
        %v971 = vunpack.c.l.b16 %v877
        %v972 = vunpack.c.h.b16 %v877
        %v973 = vunpack.c.l.b16 %v878
        %v974 = vunpack.c.h.b16 %v878
        %v975 = vpack.c.b16 %v913, %v911
        %v976 = vpack.c.b16 %v914, %v912
        %v977 = vpack.c.b16 %v917, %v915
        %v978 = vpack.c.b16 %v918, %v916
        %v979 = vpack.c.b16 %v921, %v919
        %v980 = vpack.c.b16 %v922, %v920
        %v981 = vpack.c.b16 %v925, %v923
        %v982 = vpack.c.b16 %v926, %v924
        %v983 = vpack.c.b16 %v929, %v927
        %v984 = vpack.c.b16 %v930, %v928
        %v985 = vpack.c.b16 %v933, %v931
        %v986 = vpack.c.b16 %v934, %v932
        %v987 = vpack.c.b16 %v937, %v935
        %v988 = vpack.c.b16 %v938, %v936
        %v989 = vpack.c.b16 %v941, %v939
        %v990 = vpack.c.b16 %v942, %v940
        %v991 = vpack.c.b16 %v945, %v943
        %v992 = vpack.c.b16 %v946, %v944
        %v993 = vpack.c.b16 %v949, %v947
        %v994 = vpack.c.b16 %v950, %v948
        %v995 = vpack.c.b16 %v953, %v951
        %v996 = vpack.c.b16 %v954, %v952
        %v997 = vpack.c.b16 %v957, %v955
        %v998 = vpack.c.b16 %v958, %v956
        %v999 = vpack.c.b16 %v961, %v959
        %v1000 = vpack.c.b16 %v962, %v960
        %v1001 = vpack.c.b16 %v965, %v963
        %v1002 = vpack.c.b16 %v966, %v964
        %v1003 = vpack.c.b16 %v969, %v967
        %v1004 = vpack.c.b16 %v970, %v968
        %v1005 = vpack.c.b16 %v973, %v971
        %v1006 = vpack.c.b16 %v974, %v972
        %1039 = vmatprep.subr.bf16.mxu0 %v990
        %1040 = vmatpush1.bf16.xpose.msra.mxu0 %v989
        %1041 = vmatprep.subr.bf16.mxu0 %v988
        %1042 = vmatpush1.bf16.xpose.msra.mxu0 %v987
        %1043 = vmatprep.subr.bf16.mxu0 %v986
        %1044 = vmatpush1.bf16.xpose.msra.mxu0 %v985
        %1045 = vmatprep.subr.bf16.mxu0 %v984
        %1046 = vmatpush1.bf16.xpose.msra.mxu0 %v983
        %1047 = vmatprep.subr.bf16.mxu0 %v982
        %1048 = vmatpush1.bf16.xpose.msra.mxu0 %v981
        %1049 = vmatprep.subr.bf16.mxu0 %v980
        %1050 = vmatpush1.bf16.xpose.msra.mxu0 %v979
        %1051 = vmatprep.subr.bf16.mxu0 %v978
        %1052 = vmatpush1.bf16.xpose.msra.mxu0 %v977
        %1053 = vmatprep.subr.bf16.mxu0 %v976
        %1054 = vmatpush1.bf16.xpose.msra.mxu0 %v975
        %1055 = vmatprep.subr.bf16.mxu0 %v1006
        %1056 = vmatpush2.bf16.xpose.msra.mxu0 %v1005
        %1057 = vmatprep.subr.bf16.mxu0 %v1004
        %1058 = vmatpush2.bf16.xpose.msra.mxu0 %v1003
        %1059 = vmatprep.subr.bf16.mxu0 %v1002
        %1060 = vmatpush2.bf16.xpose.msra.mxu0 %v1001
        %1061 = vmatprep.subr.bf16.mxu0 %v1000
        %1062 = vmatpush2.bf16.xpose.msra.mxu0 %v999
        %1063 = vmatprep.subr.bf16.mxu0 %v998
        %1064 = vmatpush2.bf16.xpose.msra.mxu0 %v997
        %1065 = vmatprep.subr.bf16.mxu0 %v996
        %1066 = vmatpush2.bf16.xpose.msra.mxu0 %v995
        %1067 = vmatprep.subr.bf16.mxu0 %v994
        %1068 = vmatpush2.bf16.xpose.msra.mxu0 %v993
        %1069 = vmatprep.subr.bf16.mxu0 %v992
        %1070 = vmatpush2.bf16.xpose.msra.mxu0 %v991
        %1071 = vmatprep.mubr.bf16.mxu0 %v302
        %1072 = vmatmul.mubr.bf16.gmra.mxu0 %v301
        %v1073 = vpop.f32.mrf.mxu0
        %v1074 = vadd.f32 0.0, %v1073
        %v1075 = vpop.f32.mrf.mxu0
        %v1076 = vadd.f32 0.0, %v1075
        %v1077 = vpop.f32.mrf.mxu0
        %v1078 = vadd.f32 0.0, %v1077
        %v1079 = vpop.f32.mrf.mxu0
        %v1080 = vadd.f32 0.0, %v1079
        %1081 = vmatprep.mubr.bf16.mxu0 %v304
        %1082 = vmatmul.mubr.bf16.gmra.mxu0 %v303
        %v1083 = vpop.f32.mrf.mxu0
        %v1084 = vadd.f32 0.0, %v1083
        %v1085 = vpop.f32.mrf.mxu0
        %v1086 = vadd.f32 0.0, %v1085
        %v1087 = vpop.f32.mrf.mxu0
        %v1088 = vadd.f32 0.0, %v1087
        %v1089 = vpop.f32.mrf.mxu0
        %v1090 = vadd.f32 0.0, %v1089
        %1091 = vmatprep.mubr.bf16.mxu0 %v306
        %1092 = vmatmul.mubr.bf16.gmra.mxu0 %v305
        %v1093 = vpop.f32.mrf.mxu0
        %v1094 = vadd.f32 0.0, %v1093
        %v1095 = vpop.f32.mrf.mxu0
        %v1096 = vadd.f32 0.0, %v1095
        %v1097 = vpop.f32.mrf.mxu0
        %v1098 = vadd.f32 0.0, %v1097
        %v1099 = vpop.f32.mrf.mxu0
        %v1100 = vadd.f32 0.0, %v1099
        %1101 = vmatprep.mubr.bf16.mxu0 %v308
        %1102 = vmatmul.mubr.bf16.gmra.mxu0 %v307
        %v1103 = vpop.f32.mrf.mxu0
        %v1104 = vadd.f32 0.0, %v1103
        %v1105 = vpop.f32.mrf.mxu0
        %v1106 = vadd.f32 0.0, %v1105
        %v1107 = vpop.f32.mrf.mxu0
        %v1108 = vadd.f32 0.0, %v1107
        %v1109 = vpop.f32.mrf.mxu0
        %v1110 = vadd.f32 0.0, %v1109
        %1111 = vmatprep.mubr.bf16.mxu0 %v310
        %1112 = vmatmul.mubr.bf16.gmra.mxu0 %v309
        %v1113 = vpop.f32.mrf.mxu0
        %v1114 = vadd.f32 0.0, %v1113
        %v1115 = vpop.f32.mrf.mxu0
        %v1116 = vadd.f32 0.0, %v1115
        %v1117 = vpop.f32.mrf.mxu0
        %v1118 = vadd.f32 0.0, %v1117
        %v1119 = vpop.f32.mrf.mxu0
        %v1120 = vadd.f32 0.0, %v1119
        %1121 = vmatprep.mubr.bf16.mxu0 %v312
        %1122 = vmatmul.mubr.bf16.gmra.mxu0 %v311
        %v1123 = vpop.f32.mrf.mxu0
        %v1124 = vadd.f32 0.0, %v1123
        %v1125 = vpop.f32.mrf.mxu0
        %v1126 = vadd.f32 0.0, %v1125
        %v1127 = vpop.f32.mrf.mxu0
        %v1128 = vadd.f32 0.0, %v1127
        %v1129 = vpop.f32.mrf.mxu0
        %v1130 = vadd.f32 0.0, %v1129
        %1131 = vmatprep.mubr.bf16.mxu0 %v314
        %1132 = vmatmul.mubr.bf16.gmra.mxu0 %v313
        %v1133 = vpop.f32.mrf.mxu0
        %v1134 = vadd.f32 0.0, %v1133
        %v1135 = vpop.f32.mrf.mxu0
        %v1136 = vadd.f32 0.0, %v1135
        %v1137 = vpop.f32.mrf.mxu0
        %v1138 = vadd.f32 0.0, %v1137
        %v1139 = vpop.f32.mrf.mxu0
        %v1140 = vadd.f32 0.0, %v1139
        %1141 = vmatprep.mubr.bf16.mxu0 %v316
        %1142 = vmatmul.mubr.bf16.gmra.mxu0 %v315
        %v1143 = vpop.f32.mrf.mxu0
        %v1144 = vadd.f32 0.0, %v1143
        %v1145 = vpop.f32.mrf.mxu0
        %v1146 = vadd.f32 0.0, %v1145
        %v1147 = vpop.f32.mrf.mxu0
        %v1148 = vadd.f32 0.0, %v1147
        %v1149 = vpop.f32.mrf.mxu0
        %v1150 = vadd.f32 0.0, %v1149
        %1151 = vdwg.mxu0
        %1152 = vmatprep.subr.bf16.mxu0 %v990
        %1153 = vmatpush1.bf16.xpose.msra.mxu0 %v989
        %1154 = vmatprep.subr.bf16.mxu0 %v988
        %1155 = vmatpush1.bf16.xpose.msra.mxu0 %v987
        %1156 = vmatprep.subr.bf16.mxu0 %v986
        %1157 = vmatpush1.bf16.xpose.msra.mxu0 %v985
        %1158 = vmatprep.subr.bf16.mxu0 %v984
        %1159 = vmatpush1.bf16.xpose.msra.mxu0 %v983
        %1160 = vmatprep.subr.bf16.mxu0 %v982
        %1161 = vmatpush1.bf16.xpose.msra.mxu0 %v981
        %1162 = vmatprep.subr.bf16.mxu0 %v980
        %1163 = vmatpush1.bf16.xpose.msra.mxu0 %v979
        %1164 = vmatprep.subr.bf16.mxu0 %v978
        %1165 = vmatpush1.bf16.xpose.msra.mxu0 %v977
        %1166 = vmatprep.subr.bf16.mxu0 %v976
        %1167 = vmatpush1.bf16.xpose.msra.mxu0 %v975
        %1168 = vmatprep.subr.bf16.mxu0 %v1006
        %1169 = vmatpush2.bf16.xpose.msra.mxu0 %v1005
        %1170 = vmatprep.subr.bf16.mxu0 %v1004
        %1171 = vmatpush2.bf16.xpose.msra.mxu0 %v1003
        %1172 = vmatprep.subr.bf16.mxu0 %v1002
        %1173 = vmatpush2.bf16.xpose.msra.mxu0 %v1001
        %1174 = vmatprep.subr.bf16.mxu0 %v1000
        %1175 = vmatpush2.bf16.xpose.msra.mxu0 %v999
        %1176 = vmatprep.subr.bf16.mxu0 %v998
        %1177 = vmatpush2.bf16.xpose.msra.mxu0 %v997
        %1178 = vmatprep.subr.bf16.mxu0 %v996
        %1179 = vmatpush2.bf16.xpose.msra.mxu0 %v995
        %1180 = vmatprep.subr.bf16.mxu0 %v994
        %1181 = vmatpush2.bf16.xpose.msra.mxu0 %v993
        %1182 = vmatprep.subr.bf16.mxu0 %v992
        %1183 = vmatpush2.bf16.xpose.msra.mxu0 %v991
        %1184 = vmatprep.mubr.bf16.mxu0 %v671
        %1185 = vmatmul.mubr.bf16.gmra.mxu0 %v670
        %v1186 = vpop.f32.mrf.mxu0
        %v1187 = vadd.f32 0.0, %v1186
        %v1188 = vpop.f32.mrf.mxu0
        %v1189 = vadd.f32 0.0, %v1188
        %v1190 = vpop.f32.mrf.mxu0
        %v1191 = vadd.f32 0.0, %v1190
        %v1192 = vpop.f32.mrf.mxu0
        %v1193 = vadd.f32 0.0, %v1192
        %1194 = vmatprep.mubr.bf16.mxu0 %v673
        %1195 = vmatmul.mubr.bf16.gmra.mxu0 %v672
        %v1196 = vpop.f32.mrf.mxu0
        %v1197 = vadd.f32 0.0, %v1196
        %v1198 = vpop.f32.mrf.mxu0
        %v1199 = vadd.f32 0.0, %v1198
        %v1200 = vpop.f32.mrf.mxu0
        %v1201 = vadd.f32 0.0, %v1200
        %v1202 = vpop.f32.mrf.mxu0
        %v1203 = vadd.f32 0.0, %v1202
        %1204 = vmatprep.mubr.bf16.mxu0 %v675
        %1205 = vmatmul.mubr.bf16.gmra.mxu0 %v674
        %v1206 = vpop.f32.mrf.mxu0
        %v1207 = vadd.f32 0.0, %v1206
        %v1208 = vpop.f32.mrf.mxu0
        %v1209 = vadd.f32 0.0, %v1208
        %v1210 = vpop.f32.mrf.mxu0
        %v1211 = vadd.f32 0.0, %v1210
        %v1212 = vpop.f32.mrf.mxu0
        %v1213 = vadd.f32 0.0, %v1212
        %1214 = vmatprep.mubr.bf16.mxu0 %v677
        %1215 = vmatmul.mubr.bf16.gmra.mxu0 %v676
        %v1216 = vpop.f32.mrf.mxu0
        %v1217 = vadd.f32 0.0, %v1216
        %v1218 = vpop.f32.mrf.mxu0
        %v1219 = vadd.f32 0.0, %v1218
        %v1220 = vpop.f32.mrf.mxu0
        %v1221 = vadd.f32 0.0, %v1220
        %v1222 = vpop.f32.mrf.mxu0
        %v1223 = vadd.f32 0.0, %v1222
        %1224 = vmatprep.mubr.bf16.mxu0 %v679
        %1225 = vmatmul.mubr.bf16.gmra.mxu0 %v678
        %v1226 = vpop.f32.mrf.mxu0
        %v1227 = vadd.f32 0.0, %v1226
        %v1228 = vpop.f32.mrf.mxu0
        %v1229 = vadd.f32 0.0, %v1228
        %v1230 = vpop.f32.mrf.mxu0
        %v1231 = vadd.f32 0.0, %v1230
        %v1232 = vpop.f32.mrf.mxu0
        %v1233 = vadd.f32 0.0, %v1232
        %1234 = vmatprep.mubr.bf16.mxu0 %v681
        %1235 = vmatmul.mubr.bf16.gmra.mxu0 %v680
        %v1236 = vpop.f32.mrf.mxu0
        %v1237 = vadd.f32 0.0, %v1236
        %v1238 = vpop.f32.mrf.mxu0
        %v1239 = vadd.f32 0.0, %v1238
        %v1240 = vpop.f32.mrf.mxu0
        %v1241 = vadd.f32 0.0, %v1240
        %v1242 = vpop.f32.mrf.mxu0
        %v1243 = vadd.f32 0.0, %v1242
        %1244 = vmatprep.mubr.bf16.mxu0 %v683
        %1245 = vmatmul.mubr.bf16.gmra.mxu0 %v682
        %v1246 = vpop.f32.mrf.mxu0
        %v1247 = vadd.f32 0.0, %v1246
        %v1248 = vpop.f32.mrf.mxu0
        %v1249 = vadd.f32 0.0, %v1248
        %v1250 = vpop.f32.mrf.mxu0
        %v1251 = vadd.f32 0.0, %v1250
        %v1252 = vpop.f32.mrf.mxu0
        %v1253 = vadd.f32 0.0, %v1252
        %1254 = vmatprep.mubr.bf16.mxu0 %v685
        %1255 = vmatmul.mubr.bf16.gmra.mxu0 %v684
        %v1256 = vpop.f32.mrf.mxu0
        %v1257 = vadd.f32 0.0, %v1256
        %v1258 = vpop.f32.mrf.mxu0
        %v1259 = vadd.f32 0.0, %v1258
        %v1260 = vpop.f32.mrf.mxu0
        %v1261 = vadd.f32 0.0, %v1260
        %v1262 = vpop.f32.mrf.mxu0
        %v1263 = vadd.f32 0.0, %v1262
        %1264 = vdwg.mxu0
        %v1265 = vmax.f32 %v1074, %v1187
        %v1266 = vmax.f32 %v1076, %v1189
        %v1267 = vmax.f32 %v1078, %v1191
        %v1268 = vmax.f32 %v1080, %v1193
        %v1269 = vmax.f32 %v1084, %v1197
        %v1270 = vmax.f32 %v1086, %v1199
        %v1271 = vmax.f32 %v1088, %v1201
        %v1272 = vmax.f32 %v1090, %v1203
        %v1273 = vmax.f32 %v1094, %v1207
        %v1274 = vmax.f32 %v1096, %v1209
        %v1275 = vmax.f32 %v1098, %v1211
        %v1276 = vmax.f32 %v1100, %v1213
        %v1277 = vmax.f32 %v1104, %v1217
        %v1278 = vmax.f32 %v1106, %v1219
        %v1279 = vmax.f32 %v1108, %v1221
        %v1280 = vmax.f32 %v1110, %v1223
        %v1281 = vmax.f32 %v1114, %v1227
        %v1282 = vmax.f32 %v1116, %v1229
        %v1283 = vmax.f32 %v1118, %v1231
        %v1284 = vmax.f32 %v1120, %v1233
        %v1285 = vmax.f32 %v1124, %v1237
        %v1286 = vmax.f32 %v1126, %v1239
        %v1287 = vmax.f32 %v1128, %v1241
        %v1288 = vmax.f32 %v1130, %v1243
        %v1289 = vmax.f32 %v1134, %v1247
        %v1290 = vmax.f32 %v1136, %v1249
        %v1291 = vmax.f32 %v1138, %v1251
        %v1292 = vmax.f32 %v1140, %v1253
        %v1293 = vmax.f32 %v1144, %v1257
        %v1294 = vmax.f32 %v1146, %v1259
        %v1295 = vmax.f32 %v1148, %v1261
        %v1296 = vmax.f32 %v1150, %v1263
        %v1297 = vadd.f32 %v815, %v1265
        %v1298 = vadd.f32 %v816, %v1266
        %v1299 = vadd.f32 %v817, %v1267
        %v1300 = vadd.f32 %v818, %v1268
        %v1301 = vadd.f32 %v819, %v1269
        %v1302 = vadd.f32 %v820, %v1270
        %v1303 = vadd.f32 %v821, %v1271
        %v1304 = vadd.f32 %v822, %v1272
        %v1305 = vadd.f32 %v823, %v1273
        %v1306 = vadd.f32 %v824, %v1274
        %v1307 = vadd.f32 %v825, %v1275
        %v1308 = vadd.f32 %v826, %v1276
        %v1309 = vadd.f32 %v827, %v1277
        %v1310 = vadd.f32 %v828, %v1278
        %v1311 = vadd.f32 %v829, %v1279
        %v1312 = vadd.f32 %v830, %v1280
        %v1313 = vadd.f32 %v831, %v1281
        %v1314 = vadd.f32 %v832, %v1282
        %v1315 = vadd.f32 %v833, %v1283
        %v1316 = vadd.f32 %v834, %v1284
        %v1317 = vadd.f32 %v835, %v1285
        %v1318 = vadd.f32 %v836, %v1286
        %v1319 = vadd.f32 %v837, %v1287
        %v1320 = vadd.f32 %v838, %v1288
        %v1321 = vadd.f32 %v839, %v1289
        %v1322 = vadd.f32 %v840, %v1290
        %v1323 = vadd.f32 %v841, %v1291
        %v1324 = vadd.f32 %v842, %v1292
        %v1325 = vadd.f32 %v843, %v1293
        %v1326 = vadd.f32 %v844, %v1294
        %v1327 = vadd.f32 %v845, %v1295
        %v1328 = vadd.f32 %v846, %v1296
        %v1329 = vld [vmem:[#allocation5 + $0x10] sm:$0xff]
        %v1330 = vld [vmem:[#allocation5 + $0x28] sm:$0xff]
        %v1331 = vld [vmem:[#allocation5 + $0x40] sm:$0xff]
        %v1332 = vld [vmem:[#allocation5 + $0x58] sm:$0xff]
        %v1333 = vld [vmem:[#allocation5 + $0x70] sm:$0xff]
        %v1334 = vld [vmem:[#allocation5 + $0x88] sm:$0xff]
        %v1335 = vld [vmem:[#allocation5 + $0xa0] sm:$0xff]
        %v1336 = vld [vmem:[#allocation5 + $0xb8] sm:$0xff]
        %v1337 = vld [vmem:[#allocation5 + $0xd0] sm:$0xff]
        %v1338 = vld [vmem:[#allocation5 + $0xe8] sm:$0xff]
        %v1339 = vld [vmem:[#allocation5 + $0x100] sm:$0xff]
        %v1340 = vld [vmem:[#allocation5 + $0x118] sm:$0xff]
        %v1341 = vld [vmem:[#allocation5 + $0x130] sm:$0xff]
        %v1342 = vld [vmem:[#allocation5 + $0x148] sm:$0xff]
        %v1343 = vld [vmem:[#allocation5 + $0x160] sm:$0xff]
        %v1344 = vld [vmem:[#allocation5 + $0x178] sm:$0xff]
        %v1345 = vld [vmem:[#allocation5 + $0x190] sm:$0xff]
        %v1346 = vld [vmem:[#allocation5 + $0x1a8] sm:$0xff]
        %v1347 = vld [vmem:[#allocation5 + $0x1c0] sm:$0xff]
        %v1348 = vld [vmem:[#allocation5 + $0x1d8] sm:$0xff]
        %v1349 = vld [vmem:[#allocation5 + $0x1f0] sm:$0xff]
        %v1350 = vld [vmem:[#allocation5 + $0x208] sm:$0xff]
        %v1351 = vld [vmem:[#allocation5 + $0x220] sm:$0xff]
        %v1352 = vld [vmem:[#allocation5 + $0x238] sm:$0xff]
        %v1353 = vld [vmem:[#allocation5 + $0x250] sm:$0xff]
        %v1354 = vld [vmem:[#allocation5 + $0x268] sm:$0xff]
        %v1355 = vld [vmem:[#allocation5 + $0x280] sm:$0xff]
        %v1356 = vld [vmem:[#allocation5 + $0x298] sm:$0xff]
        %v1357 = vld [vmem:[#allocation5 + $0x2b0] sm:$0xff]
        %v1358 = vld [vmem:[#allocation5 + $0x2c8] sm:$0xff]
        %v1359 = vld [vmem:[#allocation5 + $0x2e0] sm:$0xff]
        %v1360 = vld [vmem:[#allocation5 + $0x2f8] sm:$0xff]
        %v1393 = vunpack.c.l.b16 %v1329
        %v1394 = vunpack.c.h.b16 %v1329
        %v1395 = vunpack.c.l.b16 %v1330
        %v1396 = vunpack.c.h.b16 %v1330
        %v1397 = vunpack.c.l.b16 %v1331
        %v1398 = vunpack.c.h.b16 %v1331
        %v1399 = vunpack.c.l.b16 %v1332
        %v1400 = vunpack.c.h.b16 %v1332
        %v1401 = vunpack.c.l.b16 %v1333
        %v1402 = vunpack.c.h.b16 %v1333
        %v1403 = vunpack.c.l.b16 %v1334
        %v1404 = vunpack.c.h.b16 %v1334
        %v1405 = vunpack.c.l.b16 %v1335
        %v1406 = vunpack.c.h.b16 %v1335
        %v1407 = vunpack.c.l.b16 %v1336
        %v1408 = vunpack.c.h.b16 %v1336
        %v1409 = vunpack.c.l.b16 %v1337
        %v1410 = vunpack.c.h.b16 %v1337
        %v1411 = vunpack.c.l.b16 %v1338
        %v1412 = vunpack.c.h.b16 %v1338
        %v1413 = vunpack.c.l.b16 %v1339
        %v1414 = vunpack.c.h.b16 %v1339
        %v1415 = vunpack.c.l.b16 %v1340
        %v1416 = vunpack.c.h.b16 %v1340
        %v1417 = vunpack.c.l.b16 %v1341
        %v1418 = vunpack.c.h.b16 %v1341
        %v1419 = vunpack.c.l.b16 %v1342
        %v1420 = vunpack.c.h.b16 %v1342
        %v1421 = vunpack.c.l.b16 %v1343
        %v1422 = vunpack.c.h.b16 %v1343
        %v1423 = vunpack.c.l.b16 %v1344
        %v1424 = vunpack.c.h.b16 %v1344
        %v1425 = vunpack.c.l.b16 %v1345
        %v1426 = vunpack.c.h.b16 %v1345
        %v1427 = vunpack.c.l.b16 %v1346
        %v1428 = vunpack.c.h.b16 %v1346
        %v1429 = vunpack.c.l.b16 %v1347
        %v1430 = vunpack.c.h.b16 %v1347
        %v1431 = vunpack.c.l.b16 %v1348
        %v1432 = vunpack.c.h.b16 %v1348
        %v1433 = vunpack.c.l.b16 %v1349
        %v1434 = vunpack.c.h.b16 %v1349
        %v1435 = vunpack.c.l.b16 %v1350
        %v1436 = vunpack.c.h.b16 %v1350
        %v1437 = vunpack.c.l.b16 %v1351
        %v1438 = vunpack.c.h.b16 %v1351
        %v1439 = vunpack.c.l.b16 %v1352
        %v1440 = vunpack.c.h.b16 %v1352
        %v1441 = vunpack.c.l.b16 %v1353
        %v1442 = vunpack.c.h.b16 %v1353
        %v1443 = vunpack.c.l.b16 %v1354
        %v1444 = vunpack.c.h.b16 %v1354
        %v1445 = vunpack.c.l.b16 %v1355
        %v1446 = vunpack.c.h.b16 %v1355
        %v1447 = vunpack.c.l.b16 %v1356
        %v1448 = vunpack.c.h.b16 %v1356
        %v1449 = vunpack.c.l.b16 %v1357
        %v1450 = vunpack.c.h.b16 %v1357
        %v1451 = vunpack.c.l.b16 %v1358
        %v1452 = vunpack.c.h.b16 %v1358
        %v1453 = vunpack.c.l.b16 %v1359
        %v1454 = vunpack.c.h.b16 %v1359
        %v1455 = vunpack.c.l.b16 %v1360
        %v1456 = vunpack.c.h.b16 %v1360
        %v1457 = vpack.c.b16 %v1395, %v1393
        %v1458 = vpack.c.b16 %v1396, %v1394
        %v1459 = vpack.c.b16 %v1399, %v1397
        %v1460 = vpack.c.b16 %v1400, %v1398
        %v1461 = vpack.c.b16 %v1403, %v1401
        %v1462 = vpack.c.b16 %v1404, %v1402
        %v1463 = vpack.c.b16 %v1407, %v1405
        %v1464 = vpack.c.b16 %v1408, %v1406
        %v1465 = vpack.c.b16 %v1411, %v1409
        %v1466 = vpack.c.b16 %v1412, %v1410
        %v1467 = vpack.c.b16 %v1415, %v1413
        %v1468 = vpack.c.b16 %v1416, %v1414
        %v1469 = vpack.c.b16 %v1419, %v1417
        %v1470 = vpack.c.b16 %v1420, %v1418
        %v1471 = vpack.c.b16 %v1423, %v1421
        %v1472 = vpack.c.b16 %v1424, %v1422
        %v1473 = vpack.c.b16 %v1427, %v1425
        %v1474 = vpack.c.b16 %v1428, %v1426
        %v1475 = vpack.c.b16 %v1431, %v1429
        %v1476 = vpack.c.b16 %v1432, %v1430
        %v1477 = vpack.c.b16 %v1435, %v1433
        %v1478 = vpack.c.b16 %v1436, %v1434
        %v1479 = vpack.c.b16 %v1439, %v1437
        %v1480 = vpack.c.b16 %v1440, %v1438
        %v1481 = vpack.c.b16 %v1443, %v1441
        %v1482 = vpack.c.b16 %v1444, %v1442
        %v1483 = vpack.c.b16 %v1447, %v1445
        %v1484 = vpack.c.b16 %v1448, %v1446
        %v1485 = vpack.c.b16 %v1451, %v1449
        %v1486 = vpack.c.b16 %v1452, %v1450
        %v1487 = vpack.c.b16 %v1455, %v1453
        %v1488 = vpack.c.b16 %v1456, %v1454
        %1521 = vmatprep.subr.bf16.mxu0 %v1472
        %1522 = vmatpush1.bf16.xpose.msra.mxu0 %v1471
        %1523 = vmatprep.subr.bf16.mxu0 %v1470
        %1524 = vmatpush1.bf16.xpose.msra.mxu0 %v1469
        %1525 = vmatprep.subr.bf16.mxu0 %v1468
        %1526 = vmatpush1.bf16.xpose.msra.mxu0 %v1467
        %1527 = vmatprep.subr.bf16.mxu0 %v1466
        %1528 = vmatpush1.bf16.xpose.msra.mxu0 %v1465
        %1529 = vmatprep.subr.bf16.mxu0 %v1464
        %1530 = vmatpush1.bf16.xpose.msra.mxu0 %v1463
        %1531 = vmatprep.subr.bf16.mxu0 %v1462
        %1532 = vmatpush1.bf16.xpose.msra.mxu0 %v1461
        %1533 = vmatprep.subr.bf16.mxu0 %v1460
        %1534 = vmatpush1.bf16.xpose.msra.mxu0 %v1459
        %1535 = vmatprep.subr.bf16.mxu0 %v1458
        %1536 = vmatpush1.bf16.xpose.msra.mxu0 %v1457
        %1537 = vmatprep.subr.bf16.mxu0 %v1488
        %1538 = vmatpush2.bf16.xpose.msra.mxu0 %v1487
        %1539 = vmatprep.subr.bf16.mxu0 %v1486
        %1540 = vmatpush2.bf16.xpose.msra.mxu0 %v1485
        %1541 = vmatprep.subr.bf16.mxu0 %v1484
        %1542 = vmatpush2.bf16.xpose.msra.mxu0 %v1483
        %1543 = vmatprep.subr.bf16.mxu0 %v1482
        %1544 = vmatpush2.bf16.xpose.msra.mxu0 %v1481
        %1545 = vmatprep.subr.bf16.mxu0 %v1480
        %1546 = vmatpush2.bf16.xpose.msra.mxu0 %v1479
        %1547 = vmatprep.subr.bf16.mxu0 %v1478
        %1548 = vmatpush2.bf16.xpose.msra.mxu0 %v1477
        %1549 = vmatprep.subr.bf16.mxu0 %v1476
        %1550 = vmatpush2.bf16.xpose.msra.mxu0 %v1475
        %1551 = vmatprep.subr.bf16.mxu0 %v1474
        %1552 = vmatpush2.bf16.xpose.msra.mxu0 %v1473
        %1553 = vmatprep.mubr.bf16.mxu0 %v302
        %1554 = vmatmul.mubr.bf16.gmra.mxu0 %v301
        %v1555 = vpop.f32.mrf.mxu0
        %v1556 = vadd.f32 0.0, %v1555
        %v1557 = vpop.f32.mrf.mxu0
        %v1558 = vadd.f32 0.0, %v1557
        %v1559 = vpop.f32.mrf.mxu0
        %v1560 = vadd.f32 0.0, %v1559
        %v1561 = vpop.f32.mrf.mxu0
        %v1562 = vadd.f32 0.0, %v1561
        %1563 = vmatprep.mubr.bf16.mxu0 %v304
        %1564 = vmatmul.mubr.bf16.gmra.mxu0 %v303
        %v1565 = vpop.f32.mrf.mxu0
        %v1566 = vadd.f32 0.0, %v1565
        %v1567 = vpop.f32.mrf.mxu0
        %v1568 = vadd.f32 0.0, %v1567
        %v1569 = vpop.f32.mrf.mxu0
        %v1570 = vadd.f32 0.0, %v1569
        %v1571 = vpop.f32.mrf.mxu0
        %v1572 = vadd.f32 0.0, %v1571
        %1573 = vmatprep.mubr.bf16.mxu0 %v306
        %1574 = vmatmul.mubr.bf16.gmra.mxu0 %v305
        %v1575 = vpop.f32.mrf.mxu0
        %v1576 = vadd.f32 0.0, %v1575
        %v1577 = vpop.f32.mrf.mxu0
        %v1578 = vadd.f32 0.0, %v1577
        %v1579 = vpop.f32.mrf.mxu0
        %v1580 = vadd.f32 0.0, %v1579
        %v1581 = vpop.f32.mrf.mxu0
        %v1582 = vadd.f32 0.0, %v1581
        %1583 = vmatprep.mubr.bf16.mxu0 %v308
        %1584 = vmatmul.mubr.bf16.gmra.mxu0 %v307
        %v1585 = vpop.f32.mrf.mxu0
        %v1586 = vadd.f32 0.0, %v1585
        %v1587 = vpop.f32.mrf.mxu0
        %v1588 = vadd.f32 0.0, %v1587
        %v1589 = vpop.f32.mrf.mxu0
        %v1590 = vadd.f32 0.0, %v1589
        %v1591 = vpop.f32.mrf.mxu0
        %v1592 = vadd.f32 0.0, %v1591
        %1593 = vmatprep.mubr.bf16.mxu0 %v310
        %1594 = vmatmul.mubr.bf16.gmra.mxu0 %v309
        %v1595 = vpop.f32.mrf.mxu0
        %v1596 = vadd.f32 0.0, %v1595
        %v1597 = vpop.f32.mrf.mxu0
        %v1598 = vadd.f32 0.0, %v1597
        %v1599 = vpop.f32.mrf.mxu0
        %v1600 = vadd.f32 0.0, %v1599
        %v1601 = vpop.f32.mrf.mxu0
        %v1602 = vadd.f32 0.0, %v1601
        %1603 = vmatprep.mubr.bf16.mxu0 %v312
        %1604 = vmatmul.mubr.bf16.gmra.mxu0 %v311
        %v1605 = vpop.f32.mrf.mxu0
        %v1606 = vadd.f32 0.0, %v1605
        %v1607 = vpop.f32.mrf.mxu0
        %v1608 = vadd.f32 0.0, %v1607
        %v1609 = vpop.f32.mrf.mxu0
        %v1610 = vadd.f32 0.0, %v1609
        %v1611 = vpop.f32.mrf.mxu0
        %v1612 = vadd.f32 0.0, %v1611
        %1613 = vmatprep.mubr.bf16.mxu0 %v314
        %1614 = vmatmul.mubr.bf16.gmra.mxu0 %v313
        %v1615 = vpop.f32.mrf.mxu0
        %v1616 = vadd.f32 0.0, %v1615
        %v1617 = vpop.f32.mrf.mxu0
        %v1618 = vadd.f32 0.0, %v1617
        %v1619 = vpop.f32.mrf.mxu0
        %v1620 = vadd.f32 0.0, %v1619
        %v1621 = vpop.f32.mrf.mxu0
        %v1622 = vadd.f32 0.0, %v1621
        %1623 = vmatprep.mubr.bf16.mxu0 %v316
        %1624 = vmatmul.mubr.bf16.gmra.mxu0 %v315
        %v1625 = vpop.f32.mrf.mxu0
        %v1626 = vadd.f32 0.0, %v1625
        %v1627 = vpop.f32.mrf.mxu0
        %v1628 = vadd.f32 0.0, %v1627
        %v1629 = vpop.f32.mrf.mxu0
        %v1630 = vadd.f32 0.0, %v1629
        %v1631 = vpop.f32.mrf.mxu0
        %v1632 = vadd.f32 0.0, %v1631
        %1633 = vdwg.mxu0
        %1634 = vmatprep.subr.bf16.mxu0 %v1472
        %1635 = vmatpush1.bf16.xpose.msra.mxu0 %v1471
        %1636 = vmatprep.subr.bf16.mxu0 %v1470
        %1637 = vmatpush1.bf16.xpose.msra.mxu0 %v1469
        %1638 = vmatprep.subr.bf16.mxu0 %v1468
        %1639 = vmatpush1.bf16.xpose.msra.mxu0 %v1467
        %1640 = vmatprep.subr.bf16.mxu0 %v1466
        %1641 = vmatpush1.bf16.xpose.msra.mxu0 %v1465
        %1642 = vmatprep.subr.bf16.mxu0 %v1464
        %1643 = vmatpush1.bf16.xpose.msra.mxu0 %v1463
        %1644 = vmatprep.subr.bf16.mxu0 %v1462
        %1645 = vmatpush1.bf16.xpose.msra.mxu0 %v1461
        %1646 = vmatprep.subr.bf16.mxu0 %v1460
        %1647 = vmatpush1.bf16.xpose.msra.mxu0 %v1459
        %1648 = vmatprep.subr.bf16.mxu0 %v1458
        %1649 = vmatpush1.bf16.xpose.msra.mxu0 %v1457
        %1650 = vmatprep.subr.bf16.mxu0 %v1488
        %1651 = vmatpush2.bf16.xpose.msra.mxu0 %v1487
        %1652 = vmatprep.subr.bf16.mxu0 %v1486
        %1653 = vmatpush2.bf16.xpose.msra.mxu0 %v1485
        %1654 = vmatprep.subr.bf16.mxu0 %v1484
        %1655 = vmatpush2.bf16.xpose.msra.mxu0 %v1483
        %1656 = vmatprep.subr.bf16.mxu0 %v1482
        %1657 = vmatpush2.bf16.xpose.msra.mxu0 %v1481
        %1658 = vmatprep.subr.bf16.mxu0 %v1480
        %1659 = vmatpush2.bf16.xpose.msra.mxu0 %v1479
        %1660 = vmatprep.subr.bf16.mxu0 %v1478
        %1661 = vmatpush2.bf16.xpose.msra.mxu0 %v1477
        %1662 = vmatprep.subr.bf16.mxu0 %v1476
        %1663 = vmatpush2.bf16.xpose.msra.mxu0 %v1475
        %1664 = vmatprep.subr.bf16.mxu0 %v1474
        %1665 = vmatpush2.bf16.xpose.msra.mxu0 %v1473
        %1666 = vmatprep.mubr.bf16.mxu0 %v671
        %1667 = vmatmul.mubr.bf16.gmra.mxu0 %v670
        %v1668 = vpop.f32.mrf.mxu0
        %v1669 = vadd.f32 0.0, %v1668
        %v1670 = vpop.f32.mrf.mxu0
        %v1671 = vadd.f32 0.0, %v1670
        %v1672 = vpop.f32.mrf.mxu0
        %v1673 = vadd.f32 0.0, %v1672
        %v1674 = vpop.f32.mrf.mxu0
        %v1675 = vadd.f32 0.0, %v1674
        %1676 = vmatprep.mubr.bf16.mxu0 %v673
        %1677 = vmatmul.mubr.bf16.gmra.mxu0 %v672
        %v1678 = vpop.f32.mrf.mxu0
        %v1679 = vadd.f32 0.0, %v1678
        %v1680 = vpop.f32.mrf.mxu0
        %v1681 = vadd.f32 0.0, %v1680
        %v1682 = vpop.f32.mrf.mxu0
        %v1683 = vadd.f32 0.0, %v1682
        %v1684 = vpop.f32.mrf.mxu0
        %v1685 = vadd.f32 0.0, %v1684
        %1686 = vmatprep.mubr.bf16.mxu0 %v675
        %1687 = vmatmul.mubr.bf16.gmra.mxu0 %v674
        %v1688 = vpop.f32.mrf.mxu0
        %v1689 = vadd.f32 0.0, %v1688
        %v1690 = vpop.f32.mrf.mxu0
        %v1691 = vadd.f32 0.0, %v1690
        %v1692 = vpop.f32.mrf.mxu0
        %v1693 = vadd.f32 0.0, %v1692
        %v1694 = vpop.f32.mrf.mxu0
        %v1695 = vadd.f32 0.0, %v1694
        %1696 = vmatprep.mubr.bf16.mxu0 %v677
        %1697 = vmatmul.mubr.bf16.gmra.mxu0 %v676
        %v1698 = vpop.f32.mrf.mxu0
        %v1699 = vadd.f32 0.0, %v1698
        %v1700 = vpop.f32.mrf.mxu0
        %v1701 = vadd.f32 0.0, %v1700
        %v1702 = vpop.f32.mrf.mxu0
        %v1703 = vadd.f32 0.0, %v1702
        %v1704 = vpop.f32.mrf.mxu0
        %v1705 = vadd.f32 0.0, %v1704
        %1706 = vmatprep.mubr.bf16.mxu0 %v679
        %1707 = vmatmul.mubr.bf16.gmra.mxu0 %v678
        %v1708 = vpop.f32.mrf.mxu0
        %v1709 = vadd.f32 0.0, %v1708
        %v1710 = vpop.f32.mrf.mxu0
        %v1711 = vadd.f32 0.0, %v1710
        %v1712 = vpop.f32.mrf.mxu0
        %v1713 = vadd.f32 0.0, %v1712
        %v1714 = vpop.f32.mrf.mxu0
        %v1715 = vadd.f32 0.0, %v1714
        %1716 = vmatprep.mubr.bf16.mxu0 %v681
        %1717 = vmatmul.mubr.bf16.gmra.mxu0 %v680
        %v1718 = vpop.f32.mrf.mxu0
        %v1719 = vadd.f32 0.0, %v1718
        %v1720 = vpop.f32.mrf.mxu0
        %v1721 = vadd.f32 0.0, %v1720
        %v1722 = vpop.f32.mrf.mxu0
        %v1723 = vadd.f32 0.0, %v1722
        %v1724 = vpop.f32.mrf.mxu0
        %v1725 = vadd.f32 0.0, %v1724
        %1726 = vmatprep.mubr.bf16.mxu0 %v683
        %1727 = vmatmul.mubr.bf16.gmra.mxu0 %v682
        %v1728 = vpop.f32.mrf.mxu0
        %v1729 = vadd.f32 0.0, %v1728
        %v1730 = vpop.f32.mrf.mxu0
        %v1731 = vadd.f32 0.0, %v1730
        %v1732 = vpop.f32.mrf.mxu0
        %v1733 = vadd.f32 0.0, %v1732
        %v1734 = vpop.f32.mrf.mxu0
        %v1735 = vadd.f32 0.0, %v1734
        %1736 = vmatprep.mubr.bf16.mxu0 %v685
        %1737 = vmatmul.mubr.bf16.gmra.mxu0 %v684
        %v1738 = vpop.f32.mrf.mxu0
        %v1739 = vadd.f32 0.0, %v1738
        %v1740 = vpop.f32.mrf.mxu0
        %v1741 = vadd.f32 0.0, %v1740
        %v1742 = vpop.f32.mrf.mxu0
        %v1743 = vadd.f32 0.0, %v1742
        %v1744 = vpop.f32.mrf.mxu0
        %v1745 = vadd.f32 0.0, %v1744
        %1746 = vdwg.mxu0
        %v1747 = vmax.f32 %v1556, %v1669
        %v1748 = vmax.f32 %v1558, %v1671
        %v1749 = vmax.f32 %v1560, %v1673
        %v1750 = vmax.f32 %v1562, %v1675
        %v1751 = vmax.f32 %v1566, %v1679
        %v1752 = vmax.f32 %v1568, %v1681
        %v1753 = vmax.f32 %v1570, %v1683
        %v1754 = vmax.f32 %v1572, %v1685
        %v1755 = vmax.f32 %v1576, %v1689
        %v1756 = vmax.f32 %v1578, %v1691
        %v1757 = vmax.f32 %v1580, %v1693
        %v1758 = vmax.f32 %v1582, %v1695
        %v1759 = vmax.f32 %v1586, %v1699
        %v1760 = vmax.f32 %v1588, %v1701
        %v1761 = vmax.f32 %v1590, %v1703
        %v1762 = vmax.f32 %v1592, %v1705
        %v1763 = vmax.f32 %v1596, %v1709
        %v1764 = vmax.f32 %v1598, %v1711
        %v1765 = vmax.f32 %v1600, %v1713
        %v1766 = vmax.f32 %v1602, %v1715
        %v1767 = vmax.f32 %v1606, %v1719
        %v1768 = vmax.f32 %v1608, %v1721
        %v1769 = vmax.f32 %v1610, %v1723
        %v1770 = vmax.f32 %v1612, %v1725
        %v1771 = vmax.f32 %v1616, %v1729
        %v1772 = vmax.f32 %v1618, %v1731
        %v1773 = vmax.f32 %v1620, %v1733
        %v1774 = vmax.f32 %v1622, %v1735
        %v1775 = vmax.f32 %v1626, %v1739
        %v1776 = vmax.f32 %v1628, %v1741
        %v1777 = vmax.f32 %v1630, %v1743
        %v1778 = vmax.f32 %v1632, %v1745
        %v1779 = vadd.f32 %v1297, %v1747
        %v1780 = vadd.f32 %v1298, %v1748
        %v1781 = vadd.f32 %v1299, %v1749
        %v1782 = vadd.f32 %v1300, %v1750
        %v1783 = vadd.f32 %v1301, %v1751
        %v1784 = vadd.f32 %v1302, %v1752
        %v1785 = vadd.f32 %v1303, %v1753
        %v1786 = vadd.f32 %v1304, %v1754
        %v1787 = vadd.f32 %v1305, %v1755
        %v1788 = vadd.f32 %v1306, %v1756
        %v1789 = vadd.f32 %v1307, %v1757
        %v1790 = vadd.f32 %v1308, %v1758
        %v1791 = vadd.f32 %v1309, %v1759
        %v1792 = vadd.f32 %v1310, %v1760
        %v1793 = vadd.f32 %v1311, %v1761
        %v1794 = vadd.f32 %v1312, %v1762
        %v1795 = vadd.f32 %v1313, %v1763
        %v1796 = vadd.f32 %v1314, %v1764
        %v1797 = vadd.f32 %v1315, %v1765
        %v1798 = vadd.f32 %v1316, %v1766
        %v1799 = vadd.f32 %v1317, %v1767
        %v1800 = vadd.f32 %v1318, %v1768
        %v1801 = vadd.f32 %v1319, %v1769
        %v1802 = vadd.f32 %v1320, %v1770
        %v1803 = vadd.f32 %v1321, %v1771
        %v1804 = vadd.f32 %v1322, %v1772
        %v1805 = vadd.f32 %v1323, %v1773
        %v1806 = vadd.f32 %v1324, %v1774
        %v1807 = vadd.f32 %v1325, %v1775
        %v1808 = vadd.f32 %v1326, %v1776
        %v1809 = vadd.f32 %v1327, %v1777
        %v1810 = vadd.f32 %v1328, %v1778
        %1811 = vst [vmem:[%s200] sm:$0xff] %v1779
        %1812 = vst [vmem:[%s200 + $0x8] sm:$0xff] %v1780
        %1813 = vst [vmem:[%s200 + $0x10] sm:$0xff] %v1781
        %1814 = vst [vmem:[%s200 + $0x18] sm:$0xff] %v1782
        %1815 = vst [vmem:[%s200 + $0x20] sm:$0xff] %v1783
        %1816 = vst [vmem:[%s200 + $0x28] sm:$0xff] %v1784
        %1817 = vst [vmem:[%s200 + $0x30] sm:$0xff] %v1785
        %1818 = vst [vmem:[%s200 + $0x38] sm:$0xff] %v1786
        %1819 = vst [vmem:[%s200 + $0x40] sm:$0xff] %v1787
        %1820 = vst [vmem:[%s200 + $0x48] sm:$0xff] %v1788
        %1821 = vst [vmem:[%s200 + $0x50] sm:$0xff] %v1789
        %1822 = vst [vmem:[%s200 + $0x58] sm:$0xff] %v1790
        %1823 = vst [vmem:[%s200 + $0x60] sm:$0xff] %v1791
        %1824 = vst [vmem:[%s200 + $0x68] sm:$0xff] %v1792
        %1825 = vst [vmem:[%s200 + $0x70] sm:$0xff] %v1793
        %1826 = vst [vmem:[%s200 + $0x78] sm:$0xff] %v1794
        %1827 = vst [vmem:[%s200 + $0x80] sm:$0xff] %v1795
        %1828 = vst [vmem:[%s200 + $0x88] sm:$0xff] %v1796
        %1829 = vst [vmem:[%s200 + $0x90] sm:$0xff] %v1797
        %1830 = vst [vmem:[%s200 + $0x98] sm:$0xff] %v1798
        %1831 = vst [vmem:[%s200 + $0xa0] sm:$0xff] %v1799
        %1832 = vst [vmem:[%s200 + $0xa8] sm:$0xff] %v1800
        %1833 = vst [vmem:[%s200 + $0xb0] sm:$0xff] %v1801
        %1834 = vst [vmem:[%s200 + $0xb8] sm:$0xff] %v1802
        %1835 = vst [vmem:[%s200 + $0xc0] sm:$0xff] %v1803
        %1836 = vst [vmem:[%s200 + $0xc8] sm:$0xff] %v1804
        %1837 = vst [vmem:[%s200 + $0xd0] sm:$0xff] %v1805
        %1838 = vst [vmem:[%s200 + $0xd8] sm:$0xff] %v1806
        %1839 = vst [vmem:[%s200 + $0xe0] sm:$0xff] %v1807
        %1840 = vst [vmem:[%s200 + $0xe8] sm:$0xff] %v1808
        %1841 = vst [vmem:[%s200 + $0xf0] sm:$0xff] %v1809
        %1842 = vst [vmem:[%s200 + $0xf8] sm:$0xff] %v1810
        %s1843 = sand.u32 %s94, 1
        %s1844 = scalar_lea.sflag [#allocation4], %s1843
        %s1845 = sand.u32 %s94, 1
        %s1846 = smul.addr %s1845, 256
        %s1847 = scalar_lea.vmem [#allocation7], %s1846
        // Predicated region
        $region37: #{tpu_custom_call.1} parent=27 // pred_check
          %p1848 = pneg %p104
        $region38: #{tpu_custom_call.1} parent=27 // pred_check_branch
          %1850 = sbr.rel (%p1848) target = $region40
        $region39: #{tpu_custom_call.1} parent=27 // pred_region
          %s1851 = smul.u32 16, %s24
          %s1852 = smul.u32 2, %s25
          %s1854 = ssub.s32 4096, 4096
          %1855 = vsyncadd %s1844, %s1854
          %s1856 = smul.addr %s1851, 2
          %s1857 = sadd.s32 %s1852, %s1856
          %s1858 = smul.addr %s1857, 128
          %s1859 = scalar_lea.hbm %s2, %s1858
          %s1860 = sshll.u32 %s1847, 4
          %s1861 = int_to_ptr.vmem [resolvable:$true] %s1860
          %1866 = dma.vmem_to_hbm [thread:$0]  %s1861, 4096, %s1859, %s1844, 256, 256, 16
        $region40: #{tpu_custom_call.1} parent=27 // pred_fallthru
          _
      $region28: #{tpu_custom_call.1} parent=5 // pred_fallthru
        _
      %p1867 = scmp.le.s32.totalorder 2, %s15
      // Predicated region
      $region41: #{tpu_custom_call.1} parent=5 // pred_check
        %p1868 = pneg %p1867
      $region42: #{tpu_custom_call.1} parent=5 // pred_check_branch
        %1870 = sbr.rel (%p1868) target = $region44
      $region43: #{tpu_custom_call.1} parent=5 // pred_region
        %s1871 = ssub.s32 %s15, 2
        // Predicated region
        $region45: #{tpu_custom_call.1} parent=43 // pred_check
          %p1872 = pneg %p110
        $region46: #{tpu_custom_call.1} parent=43 // pred_check_branch
          %1874 = sbr.rel (%p1872) target = $region48
        $region47: #{tpu_custom_call.1} parent=43 // pred_region
          %s1875 = sand.u32 %s95, 1
          %s1876 = scalar_lea.sflag [#allocation4], %s1875
          %s1877 = sand.u32 %s95, 1
          %s1878 = smul.addr %s1877, 256
          %s1879 = scalar_lea.vmem [#allocation7], %s1878
          %1880 = dma.done %s1876, 4096
        $region48: #{tpu_custom_call.1} parent=43 // pred_fallthru
          _
      $region44: #{tpu_custom_call.1} parent=5 // pred_fallthru
        _
    $region6: #{tpu_custom_call.1} parent=1 // loop_footer
      %s19 = sadd.s32 1, %s15
    $region7: #{tpu_custom_call.1} parent=1 // loop_footer_branch
      %14 = sbr.rel target = $region3
    $region8: #{tpu_custom_call.1} parent=1 // loop_exit
      _
    %1881 = vsyncpa [#allocation3], 1
    %s1882 = scalar_lea.sflag [#allocation3], 1
    %1883 = vsyncpa %s1882, 1
    %1884 = vsyncpa [#allocation6], 1
    %1885 = vsyncpa [#allocation4], 1
    %s1886 = scalar_lea.sflag [#allocation4], 1
    %1887 = vsyncpa %s1886, 1

</llo_original>
